<compile_context>
chip_gen: v7x
topology: tpu7x:2x2x1
jax: 0.10.0
libtpu: 0.0.40
codegen_flags: <defaults>
</compile_context>

<pallas_src>
import functools

import jax
import jax.numpy as jnp
from jax.experimental import pallas as pl
from jax.experimental.pallas import tpu as pltpu


def _round_up(x, m):
    return ((x + m - 1) // m) * m


def _next_pow2(x):
    x = int(x)
    return 1 if x <= 1 else 1 << (x - 1).bit_length()


def _vmem_capacity_bytes():
    """Per-TensorCore VMEM; fall back to the smallest current generation (v7x: 64 MiB)."""
    try:
        return int(pltpu.get_tpu_info().vmem_capacity_bytes)
    except Exception:
        return 64 * 1024 * 1024


def _resident_spec(block_shape, index_map):
    """BlockSpec for truly-resident operands (weights / bias): single-buffer them so their
    VMEM footprint halves and can be reinvested in larger A / X tiles."""
    try:
        return pl.BlockSpec(block_shape, index_map, pipeline_mode=pl.Buffered(1))
    except (AttributeError, TypeError, ValueError):
        # jax version without BlockSpec.pipeline_mode -> default double-buffering.
        return pl.BlockSpec(block_shape, index_map)


def _sage_conv_kernel(a_ref, x_ref, xdst_ref, ws_ref, wn_ref, b_ref, o_ref, acc_ref, *,
                      apply_relu):
    # a_ref    : (tm, tk)   bf16 row-normalized block adjacency tile (streamed)
    # x_ref    : (tk, Fp)   bf16 source-feature tile (k-indexed view of X)
    # xdst_ref : (tm, Fp)   bf16 dst-feature tile (i-indexed view of the SAME X array)
    # ws_ref   : (Fp, Op)   bf16 W_self   (resident, single-buffered)
    # wn_ref   : (Fp, Op)   bf16 W_neigh  (resident, single-buffered)
    # b_ref    : (1, Op)    f32 bias      (resident, single-buffered)
    # o_ref    : (tm, Op)   output tile (written on the last k step)
    # acc_ref  : (tm, Fp)   f32 scratch accumulator for neigh = A @ X
    k = pl.program_id(1)

    @pl.when(k == 0)
    def _():
        acc_ref[...] = jnp.zeros_like(acc_ref)

    # Mean aggregation: bf16 MXU matmul, f32 accumulation across the k (source) axis.
    acc_ref[...] += jnp.dot(a_ref[...], x_ref[...],
                            preferred_element_type=jnp.float32)

    @pl.when(k == pl.num_programs(1) - 1)
    def _():
        # Concat-free epilogue: two bf16 MXU matmuls with f32 accumulation,
        # h = X_dst @ W_self + neigh @ W_neigh + bias (+ ReLU). No (tm, 2*Fp) f32 temp.
        out = jnp.dot(xdst_ref[...], ws_ref[...], preferred_element_type=jnp.float32)
        out = out + jnp.dot(acc_ref[...].astype(jnp.bfloat16), wn_ref[...],
                            preferred_element_type=jnp.float32)
        out = out + b_ref[...]
        if apply_relu:
            out = jnp.maximum(out, 0.0)
        o_ref[...] = out.astype(o_ref.dtype)


def sage_conv(a, x, w_self, w_neigh, bias, *, tm, tk, apply_relu, out_dtype,
              vmem_limit_bytes):
    """One DGL-style SAGEConv('mean') layer on tile-aligned, pre-padded bf16 inputs.

    a : (Dp, Sp) bf16 row-normalized block adjacency (zero-padded), Dp % tm == 0, Sp % tk == 0
    x : (Xr, Fp) bf16 source features (zero-padded), Xr >= Sp and Xr >= Dp. Dst features are
        X[:Dp] (DGL block convention) and are read through a second i-indexed BlockSpec view
        of the same array, so no X_dst copy is ever materialized.
    Returns the full padded (Dp, Op) output; callers slice back to logical shape only once,
    at the very end of the network.
    """
    d_p, s_p = a.shape
    x_rows, f_p = x.shape
    o_p = w_self.shape[1]
    assert a.dtype == jnp.bfloat16 and x.dtype == jnp.bfloat16
    assert w_self.dtype == jnp.bfloat16 and w_neigh.dtype == jnp.bfloat16
    assert w_self.shape == (f_p, o_p) and w_neigh.shape == (f_p, o_p)
    assert bias.shape == (1, o_p) and bias.dtype == jnp.float32
    assert d_p % tm == 0 and s_p % tk == 0
    assert f_p % 128 == 0 and o_p % 128 == 0
    assert x_rows >= s_p and x_rows >= d_p

    ni, nk = d_p // tm, s_p // tk
    kernel = functools.partial(_sage_conv_kernel, apply_relu=apply_relu)

    out_itemsize = jnp.dtype(out_dtype).itemsize
    flops = 2 * d_p * s_p * f_p + 4 * d_p * f_p * o_p
    bytes_accessed = (d_p * s_p * 2            # A, read exactly once
                      + ni * s_p * f_p * 2     # X re-read once per row block
                      + d_p * f_p * 2          # dst view of X
                      + 2 * f_p * o_p * 2 + o_p * 4
                      + d_p * o_p * out_itemsize)

    return pl.pallas_call(
        kernel,
        out_shape=jax.ShapeDtypeStruct((d_p, o_p), out_dtype),
        grid_spec=pltpu.PrefetchScalarGridSpec(
            num_scalar_prefetch=0,
            grid=(ni, nk),
            in_specs=[
                pl.BlockSpec((tm, tk), lambda i, k: (i, k)),       # A tile (streamed)
                pl.BlockSpec((tk, f_p), lambda i, k: (k, 0)),      # X tile (streamed over k)
                pl.BlockSpec((tm, f_p), lambda i, k: (i, 0)),      # X dst view (changes w/ i)
                _resident_spec((f_p, o_p), lambda i, k: (0, 0)),   # W_self (resident)
                _resident_spec((f_p, o_p), lambda i, k: (0, 0)),   # W_neigh (resident)
                _resident_spec((1, o_p), lambda i, k: (0, 0)),     # bias (resident)
            ],
            out_specs=pl.BlockSpec((tm, o_p), lambda i, k: (i, 0)),
            scratch_shapes=[pltpu.VMEM((tm, f_p), jnp.float32)],
        ),
        compiler_params=pltpu.CompilerParams(
            # dst-row axis is embarrassingly parallel (megacore on v7x);
            # source axis is the reduction -> last + "arbitrary".
            dimension_semantics=("parallel", "arbitrary"),
            vmem_limit_bytes=int(vmem_limit_bytes)),
        cost_estimate=pl.CostEstimate(
            flops=int(flops), transcendentals=0,
            bytes_accessed=int(bytes_accessed)),
    )(a, x, x, w_self, w_neigh, bias)


def _layer_tiles(d, s, f_p, o_p, *, tm_target, tk_target, vmem_budget, out_itemsize):
    """Pick power-of-two (tm, tk) tiles: as large as the VMEM budget allows, keeping
    >= 2 row blocks when possible so the parallel axis can shard over v7x's 2 cores."""
    tm = max(16, min(tm_target, _next_pow2(d)))
    tk = max(128, min(tk_target, _next_pow2(s)))

    def working_set(tm_, tk_):
        return (2 * tm_ * tk_ * 2              # A tiles, double-buffered bf16
                + 2 * tk_ * f_p * 2            # X tiles, double-buffered bf16
                + 2 * tm_ * f_p * 2            # dst view, double-buffered bf16
                + 2 * f_p * o_p * 2            # W_self + W_neigh, single-buffered bf16
                + o_p * 4                      # bias
                + 2 * tm_ * o_p * out_itemsize # output tiles
                + tm_ * f_p * 4)               # f32 accumulator scratch

    while working_set(tm, tk) > vmem_budget:
        if tk > 512 and tk >= 2 * tm:
            tk //= 2
        elif tm > 256:
            tm //= 2
        elif tk > 128:
            tk //= 2
        else:
            break
    while tm > 256 and _round_up(d, tm) // tm < 2:   # keep the i axis shardable (v7x)
        tm //= 2
    return tm, tk, working_set(tm, tk)


def plan_graphsage(n_src0, n_dst0, n_src1, n_dst1, in_feats, hid_feats, out_feats, *,
                   tm_target=1024, tk_target=2048):
    """Tile / padding plan. Node paddings are chosen so layer-1's padded bf16 output feeds
    layer-2 directly (no slice, no re-pad, no extra HBM round trip of h)."""
    assert n_dst0 <= n_src0 and n_dst1 <= n_src1
    assert n_src1 <= n_dst0, "DGL MFG contract: block1's src nodes are block0's dst nodes"

    cap = _vmem_capacity_bytes()
    budget = int(0.6 * cap)   # headroom for Mosaic-internal scratch / semaphores

    f0_p = _round_up(in_feats, 128)
    hid_p = _round_up(hid_feats, 128)
    o_p = _round_up(out_feats, 128)

    tm0, tk0, ws0 = _layer_tiles(n_dst0, n_src0, f0_p, hid_p, tm_target=tm_target,
                                 tk_target=tk_target, vmem_budget=budget, out_itemsize=2)
    tm1, tk1, ws1 = _layer_tiles(n_dst1, n_src1, hid_p, o_p, tm_target=tm_target,
                                 tk_target=tk_target, vmem_budget=budget, out_itemsize=4)

    # All tiles are powers of two -> their max is a common multiple, so layer-1's padded
    # dst count is simultaneously a valid row-block multiple for layer 1 and a valid
    # k-block / dst-block multiple for layer 2.
    mid_align = max(tm0, tk1, tm1)
    s_p0 = _round_up(n_src0, tk0)
    d_p0 = _round_up(n_dst0, mid_align)
    d_p1 = _round_up(n_dst1, tm1)

    vmem_limit = int(min(0.85 * cap, max(1.5 * max(ws0, ws1), 32 * 1024 * 1024)))

    return dict(
        n_dst1=n_dst1, out_feats=out_feats,
        f0_p=f0_p, hid_p=hid_p, o_p=o_p,
        tm0=tm0, tk0=tk0, tm1=tm1, tk1=tk1,
        s_p0=s_p0, d_p0=d_p0, x0_rows=max(s_p0, d_p0),
        s_p1=d_p0, d_p1=d_p1,
        vmem_limit=vmem_limit,
    )


def graphsage_forward(plan, a0, a1, x0, params):
    """(a0, a1): pre-padded bf16 row-normalized dense block adjacencies;
    x0: pre-padded bf16 source features of block 0 (dst features are its leading rows)."""
    # layer 1: relu(conv1(block0, x)); h stays padded & bf16 and feeds layer 2 directly.
    h = sage_conv(a0, x0, params["w_self1"], params["w_neigh1"], params["b1"],
                  tm=plan["tm0"], tk=plan["tk0"], apply_relu=True,
                  out_dtype=jnp.bfloat16, vmem_limit_bytes=plan["vmem_limit"])
    # layer 2: conv2(block1, h)
    out = sage_conv(a1, h, params["w_self2"], params["w_neigh2"], params["b2"],
                    tm=plan["tm1"], tk=plan["tk1"], apply_relu=False,
                    out_dtype=jnp.float32, vmem_limit_bytes=plan["vmem_limit"])
    # single slice back to the logical shape, only at the very end
    return out[:plan["n_dst1"], :plan["out_feats"]]


def _reference(plan, a0, a1, x0, params):
    """Pure-JAX reference mirroring the kernel numerics (bf16 operands, f32 accumulation)."""
    def layer(a, x, ws, wn, b, relu, out_dtype):
        neigh = jnp.dot(a, x[: a.shape[1]], preferred_element_type=jnp.float32)
        xd = x[: a.shape[0]]
        out = (jnp.dot(xd, ws, preferred_element_type=jnp.float32)
               + jnp.dot(neigh.astype(jnp.bfloat16), wn,
                         preferred_element_type=jnp.float32)
               + b)
        if relu:
            out = jnp.maximum(out, 0.0)
        return out.astype(out_dtype)

    h = layer(a0, x0, params["w_self1"], params["w_neigh1"], params["b1"],
              True, jnp.bfloat16)
    out = layer(a1, h, params["w_self2"], params["w_neigh2"], params["b2"],
                False, jnp.float32)
    return out[:plan["n_dst1"], :plan["out_feats"]]


def _row_normalize(adj):
    deg = adj.sum(axis=1, keepdims=True)
    return jnp.where(deg > 0, adj / jnp.maximum(deg, 1.0), 0.0)


def _pad_cast(arr, rows, cols, dtype):
    out = jnp.zeros((rows, cols), dtype)
    return out.at[: arr.shape[0], : arr.shape[1]].set(arr.astype(dtype))


if __name__ == "__main__":
    key = jax.random.PRNGKey(0)
    in_feats, hid_feats, out_feats = 60, 120, 24

    # Block 0: 500 src -> 200 dst; Block 1: 200 src -> 100 dst (DGL MFG convention).
    n_src0, n_dst0 = 500, 200
    n_src1, n_dst1 = 200, 100

    # Small tile targets here so the demo exercises a real multi-tile grid (K accumulation
    # across two k steps + two parallel row blocks) and the padding paths; production
    # defaults are tm_target=1024 / tk_target=2048, capped by detected per-core VMEM.
    plan = plan_graphsage(n_src0, n_dst0, n_src1, n_dst1,
                          in_feats, hid_feats, out_feats,
                          tm_target=128, tk_target=256)

    k_a0, k_a1, k_x, k1, k2, k3, k4 = jax.random.split(key, 7)

    # --- One-time "sampler / feature loader" side prep: blocks, features and weights are
    # --- emitted directly as tile-aligned, zero-padded bf16 arrays, so the kernels read
    # --- A and X exactly once (no per-call pad/cast pass over A in the hot path).
    adj0 = jax.random.bernoulli(k_a0, 0.05, (n_dst0, n_src0)).astype(jnp.float32)
    adj1 = jax.random.bernoulli(k_a1, 0.08, (n_dst1, n_src1)).astype(jnp.float32)
    a0 = _pad_cast(_row_normalize(adj0), plan["d_p0"], plan["s_p0"], jnp.bfloat16)
    a1 = _pad_cast(_row_normalize(adj1), plan["d_p1"], plan["s_p1"], jnp.bfloat16)

    x = jax.random.normal(k_x, (n_src0, in_feats), dtype=jnp.float32)
    x0 = _pad_cast(x, plan["x0_rows"], plan["f0_p"], jnp.bfloat16)

    params = {
        "w_self1": _pad_cast(0.1 * jax.random.normal(k1, (in_feats, hid_feats)),
                             plan["f0_p"], plan["hid_p"], jnp.bfloat16),
        "w_neigh1": _pad_cast(0.1 * jax.random.normal(k2, (in_feats, hid_feats)),
                              plan["f0_p"], plan["hid_p"], jnp.bfloat16),
        "b1": _pad_cast(0.05 * jnp.ones((1, hid_feats), jnp.float32),
                        1, plan["hid_p"], jnp.float32),
        "w_self2": _pad_cast(0.1 * jax.random.normal(k3, (hid_feats, out_feats)),
                             plan["hid_p"], plan["o_p"], jnp.bfloat16),
        "w_neigh2": _pad_cast(0.1 * jax.random.normal(k4, (hid_feats, out_feats)),
                              plan["hid_p"], plan["o_p"], jnp.bfloat16),
        "b2": _pad_cast(0.05 * jnp.ones((1, out_feats), jnp.float32),
                        1, plan["o_p"], jnp.float32),
    }

    out = graphsage_forward(plan, a0, a1, x0, params)
    out = jax.block_until_ready(out)

    ref = _reference(plan, a0, a1, x0, params)
    assert out.shape == (n_dst1, out_feats)
    assert jnp.allclose(out, ref, atol=2e-2, rtol=2e-2), "mismatch vs JAX reference"

    print("KERNEL_OK")
</pallas_src>

<mosaic_0001>
module attributes {stable_mosaic.version = 11 : i64} {
  func.func @_sage_conv_kernel(%arg0: i32, %arg1: i32, %arg2: memref<128x256xbf16, #tpu.memory_space<vmem>>, %arg3: memref<256x128xbf16, #tpu.memory_space<vmem>>, %arg4: memref<128x128xbf16, #tpu.memory_space<vmem>>, %arg5: memref<128x128xbf16, #tpu.memory_space<vmem>>, %arg6: memref<128x128xbf16, #tpu.memory_space<vmem>>, %arg7: memref<1x128xf32, #tpu.memory_space<vmem>>, %arg8: memref<128x128xbf16, #tpu.memory_space<vmem>>, %arg9: memref<128x128xf32, #tpu.memory_space<vmem>>) attributes {dimension_semantics = [#tpu.dimension_semantics<parallel>, #tpu.dimension_semantics<arbitrary>], iteration_bounds = array<i64: 2, 2>, scalar_prefetch = 0 : i64, scratch_operands = 1 : i64, tpu.core_type = #tpu.core_type<tc>, window_params = [{transform_indices = @transform_0, window_bounds = array<i64: 128, 256>}, {transform_indices = @transform_1, window_bounds = array<i64: 256, 128>}, {transform_indices = @transform_2, window_bounds = array<i64: 128, 128>}, {pipeline_mode = #tpu.pipeline_mode<synchronous>, transform_indices = @transform_3, window_bounds = array<i64: 128, 128>}, {pipeline_mode = #tpu.pipeline_mode<synchronous>, transform_indices = @transform_4, window_bounds = array<i64: 128, 128>}, {pipeline_mode = #tpu.pipeline_mode<synchronous>, transform_indices = @transform_5, window_bounds = array<i64: 1, 128>}, {transform_indices = @transform_6, window_bounds = array<i64: 128, 128>}]} {
    %c0_i32 = arith.constant 0 : i32
    %0 = arith.cmpi eq, %arg1, %c0_i32 : i32
    %1 = arith.extui %0 : i1 to i32
    %c0_i32_0 = arith.constant 0 : i32
    %2 = arith.cmpi ne, %1, %c0_i32_0 : i32
    scf.if %2 {
      %cst_9 = arith.constant 0.000000e+00 : f32
      %12 = vector.broadcast %cst_9 : f32 to vector<128x128xf32>
      %c0_10 = arith.constant 0 : index
      %c0_11 = arith.constant 0 : index
      %13 = vector.load %arg9[%c0_10, %c0_11] : memref<128x128xf32, #tpu.memory_space<vmem>>, vector<128x128xf32>
      tpu.vector_store %arg9[%c0_10, %c0_11], %12 {strides = array<i32>} : memref<128x128xf32, #tpu.memory_space<vmem>>, vector<128x128xf32>,
    } else {
    }
    %c0 = arith.constant 0 : index
    %c0_1 = arith.constant 0 : index
    %3 = vector.load %arg9[%c0, %c0_1] : memref<128x128xf32, #tpu.memory_space<vmem>>, vector<128x128xf32>
    %c0_2 = arith.constant 0 : index
    %c0_3 = arith.constant 0 : index
    %4 = vector.load %arg2[%c0_2, %c0_3] : memref<128x256xbf16, #tpu.memory_space<vmem>>, vector<128x256xbf16>
    %c0_4 = arith.constant 0 : index
    %c0_5 = arith.constant 0 : index
    %5 = vector.load %arg3[%c0_4, %c0_5] : memref<256x128xbf16, #tpu.memory_space<vmem>>, vector<256x128xbf16>
    %cst = arith.constant dense<0.000000e+00> : vector<128x128xf32>
    %6 = tpu.matmul %4, %5, %cst {dimension_numbers = #tpu.dot_dimension_numbers<[1], [0], [0], [1], [0, 0, 1, 1], [], []>} : vector<128x256xbf16>, vector<256x128xbf16>, vector<128x128xf32> -> vector<128x128xf32>
    %7 = arith.addf %3, %6 : vector<128x128xf32>
    %c0_6 = arith.constant 0 : index
    %c0_7 = arith.constant 0 : index
    %8 = vector.load %arg9[%c0_6, %c0_7] : memref<128x128xf32, #tpu.memory_space<vmem>>, vector<128x128xf32>
    tpu.vector_store %arg9[%c0_6, %c0_7], %7 {strides = array<i32>} : memref<128x128xf32, #tpu.memory_space<vmem>>, vector<128x128xf32>,
    %c1_i32 = arith.constant 1 : i32
    %9 = arith.cmpi eq, %arg1, %c1_i32 : i32
    %10 = arith.extui %9 : i1 to i32
    %c0_i32_8 = arith.constant 0 : i32
    %11 = arith.cmpi ne, %10, %c0_i32_8 : i32
    scf.if %11 {
      %c0_9 = arith.constant 0 : index
      %c0_10 = arith.constant 0 : index
      %12 = vector.load %arg4[%c0_9, %c0_10] : memref<128x128xbf16, #tpu.memory_space<vmem>>, vector<128x128xbf16>
      %c0_11 = arith.constant 0 : index
      %c0_12 = arith.constant 0 : index
      %13 = vector.load %arg5[%c0_11, %c0_12] : memref<128x128xbf16, #tpu.memory_space<vmem>>, vector<128x128xbf16>
      %cst_13 = arith.constant dense<0.000000e+00> : vector<128x128xf32>
      %14 = tpu.matmul %12, %13, %cst_13 {dimension_numbers = #tpu.dot_dimension_numbers<[1], [0], [0], [1], [0, 0, 1, 1], [], []>} : vector<128x128xbf16>, vector<128x128xbf16>, vector<128x128xf32> -> vector<128x128xf32>
      %c0_14 = arith.constant 0 : index
      %c0_15 = arith.constant 0 : index
      %15 = vector.load %arg9[%c0_14, %c0_15] : memref<128x128xf32, #tpu.memory_space<vmem>>, vector<128x128xf32>
      %16 = arith.truncf %15 : vector<128x128xf32> to vector<128x128xbf16>
      %c0_16 = arith.constant 0 : index
      %c0_17 = arith.constant 0 : index
      %17 = vector.load %arg6[%c0_16, %c0_17] : memref<128x128xbf16, #tpu.memory_space<vmem>>, vector<128x128xbf16>
      %cst_18 = arith.constant dense<0.000000e+00> : vector<128x128xf32>
      %18 = tpu.matmul %16, %17, %cst_18 {dimension_numbers = #tpu.dot_dimension_numbers<[1], [0], [0], [1], [0, 0, 1, 1], [], []>} : vector<128x128xbf16>, vector<128x128xbf16>, vector<128x128xf32> -> vector<128x128xf32>
      %19 = arith.addf %14, %18 : vector<128x128xf32>
      %c0_19 = arith.constant 0 : index
      %c0_20 = arith.constant 0 : index
      %20 = vector.load %arg7[%c0_19, %c0_20] : memref<1x128xf32, #tpu.memory_space<vmem>>, vector<1x128xf32>
      %21 = vector.broadcast %20 : vector<1x128xf32> to vector<128x128xf32>
      %22 = arith.addf %19, %21 : vector<128x128xf32>
      %cst_21 = arith.constant 0.000000e+00 : f32
      %23 = vector.broadcast %cst_21 : f32 to vector<128x128xf32>
      %24 = arith.maximumf %22, %23 : vector<128x128xf32>
      %25 = arith.truncf %24 : vector<128x128xf32> to vector<128x128xbf16>
      %c0_22 = arith.constant 0 : index
      %c0_23 = arith.constant 0 : index
      %26 = vector.load %arg8[%c0_22, %c0_23] : memref<128x128xbf16, #tpu.memory_space<vmem>>, vector<128x128xbf16>
      tpu.vector_store %arg8[%c0_22, %c0_23], %25 {strides = array<i32>} : memref<128x128xbf16, #tpu.memory_space<vmem>>, vector<128x128xbf16>,
    } else {
    }
    return
  }
  func.func @transform_0(%arg0: i32, %arg1: i32) -> (i32, i32) {
    %c0_i32 = arith.constant 0 : i32
    return %arg0, %arg1 : i32, i32
  }
  func.func @transform_1(%arg0: i32, %arg1: i32) -> (i32, i32) {
    %c0_i32 = arith.constant 0 : i32
    %c0_i32_0 = arith.constant 0 : i32
    return %arg1, %c0_i32 : i32, i32
  }
  func.func @transform_2(%arg0: i32, %arg1: i32) -> (i32, i32) {
    %c0_i32 = arith.constant 0 : i32
    %c0_i32_0 = arith.constant 0 : i32
    return %arg0, %c0_i32 : i32, i32
  }
  func.func @transform_3(%arg0: i32, %arg1: i32) -> (i32, i32) {
    %c0_i32 = arith.constant 0 : i32
    %c0_i32_0 = arith.constant 0 : i32
    %c0_i32_1 = arith.constant 0 : i32
    return %c0_i32, %c0_i32_0 : i32, i32
  }
  func.func @transform_4(%arg0: i32, %arg1: i32) -> (i32, i32) {
    %c0_i32 = arith.constant 0 : i32
    %c0_i32_0 = arith.constant 0 : i32
    %c0_i32_1 = arith.constant 0 : i32
    return %c0_i32, %c0_i32_0 : i32, i32
  }
  func.func @transform_5(%arg0: i32, %arg1: i32) -> (i32, i32) {
    %c0_i32 = arith.constant 0 : i32
    %c0_i32_0 = arith.constant 0 : i32
    %c0_i32_1 = arith.constant 0 : i32
    return %c0_i32, %c0_i32_0 : i32, i32
  }
  func.func @transform_6(%arg0: i32, %arg1: i32) -> (i32, i32) {
    %c0_i32 = arith.constant 0 : i32
    %c0_i32_0 = arith.constant 0 : i32
    return %arg0, %c0_i32 : i32, i32
  }
}

</mosaic_0001>

<llo_original>
// kernel: tpu_custom_call.1
$region0: #{tpu_custom_call.1}
  #allocation0 [shape = 'u32[]', space=smem, size = 0x4, offset = 0x4, fixed_abs, tag = 'smem constant byte address 0x4 - core index']
  #allocation1 [shape = 'u32[144,128]{1,0:T(1,128)}', space=vmem, size = 0x12000, scoped, tag = 'internal scratch']
  #allocation2 [shape = 'f32[128,128]{1,0:T(8,128)}', space=vmem, size = 0x10000, scoped, tag = 'scratch operand']
  %s0 = inlined_call_operand.hbm [shape: bf16[256,512], index: 0, kind: input, shape index: {}]
  %s1 = inlined_call_operand.hbm [shape: bf16[512,128], index: 1, kind: input, shape index: {}]
  %s2 = inlined_call_operand.hbm [shape: bf16[512,128], index: 2, kind: input, shape index: {}]
  %s3 = inlined_call_operand.hbm [shape: bf16[128,128], index: 3, kind: input, shape index: {}]
  %s4 = inlined_call_operand.hbm [shape: bf16[128,128], index: 4, kind: input, shape index: {}]
  %s5 = inlined_call_operand.vmem [shape: f32[1,128], index: 5, kind: input, shape index: {}]
  %s6 = inlined_call_operand.hbm [shape: bf16[256,128], index: 6, kind: output, shape index: {}]
  %s7 = sld [smem:[#allocation0]]
  $region85: #{tpu_custom_call.1} parent=0
    _
  %s9 = ssub.s32 1, %s7
  %s10 = scalar_select 0, %s9, %s7
  $region1: #{tpu_custom_call.1} parent=0
    #allocation3 [shape = 'u8[131072]{0}', space=vmem, size = 0x20000, scoped, tag = 'input window, operand 0']
    #allocation4 [shape = 's32[2]{0}', space=sflag, size = 0x8, scoped, tag = 'scoped memory for tpu_custom_call.1']
    #allocation5 [shape = 's32[2]{0}', space=sflag, size = 0x8, scoped, tag = 'scoped memory for tpu_custom_call.1']
    #allocation6 [shape = 'u8[131072]{0}', space=vmem, size = 0x20000, scoped, tag = 'input window, operand 1']
    #allocation7 [shape = 's32[2]{0}', space=sflag, size = 0x8, scoped, tag = 'scoped memory for tpu_custom_call.1']
    #allocation8 [shape = 'u8[65536]{0}', space=vmem, size = 0x10000, scoped, tag = 'input window, operand 2']
    #allocation9 [shape = 'u8[32768]{0}', space=vmem, size = 0x8000, scoped, tag = 'input window, operand 3, single buffered']
    #allocation10 [shape = 's32[1]{0}', space=sflag, size = 0x4, scoped, tag = 'scoped memory for tpu_custom_call.1']
    #allocation11 [shape = 'u8[32768]{0}', space=vmem, size = 0x8000, scoped, tag = 'input window, operand 4, single buffered']
    #allocation12 [shape = 'u8[65536]{0}', space=vmem, size = 0x10000, scoped, tag = 'output window, operand 0']
    %11 = vsyncpa [#allocation4], 0
    %s12 = scalar_lea.sflag [#allocation4], 1
    %13 = vsyncpa %s12, 0
    %14 = vsyncpa [#allocation7], 0
    %s15 = scalar_lea.sflag [#allocation7], 1
    %16 = vsyncpa %s15, 0
    %17 = vsyncpa [#allocation10], 0
    %18 = vsyncpa [#allocation5], 0
    %s19 = scalar_lea.sflag [#allocation5], 1
    %20 = vsyncpa %s19, 0
    loop: start=0, step=1, limit=6
    $region2: #{tpu_custom_call.1} parent=1 // loop_pre_header
      _
    $region3: #{tpu_custom_call.1} parent=1 // loop_header
      %s22 = sphi 0, %s26
      %p23 = scmp.ge.s32.totalorder %s22, 6
      %s29 = sphi 0, %s41
      %s30 = sphi 0, %s37
      %s31 = sphi 0, %s29
      %s32 = sphi 0, %s30
      %s33 = sphi 0, %s31
      %s34 = sphi 0, %s32
      %s46 = sphi 0, %s48
      %s49 = sphi 0, %s46
      %s50 = sphi 0, %s49
      %s66 = sphi 0, %s50
      %s72 = sphi 0, %s74
      %s75 = sphi 0, %s72
      %s76 = sphi 0, %s75
      %s92 = sphi 0, %s76
      %s98 = sphi 0, %s100
      %s101 = sphi 0, %s98
      %s102 = sphi 0, %s101
      %s118 = sphi 0, %s102
      %s122 = sphi 0, %s122
      %s124 = sphi 0, %s122
      %s125 = sphi 0, %s124
      %s139 = sphi 0, %s125
      %s143 = sphi 0, %s143
      %s145 = sphi 0, %s143
      %s146 = sphi 0, %s145
      %s160 = sphi 0, %s146
      %s164 = sphi 0, %s164
      %s166 = sphi 0, %s164
      %s167 = sphi 0, %s166
      %s181 = sphi 0, %s167
      %s187 = sphi 0, %s189
      %s190 = sphi 0, %s187
      %s191 = sphi 0, %s190
      %s207 = sphi 0, %s191
    $region4: #{tpu_custom_call.1} parent=1 // loop_header_branch
      %25 = sbr.rel (%p23) target = $region8
    $region5: #{tpu_custom_call.1} parent=1 // loop_body
      %s27 = ssub.s32 %s22, 1
      %s28 = ssub.s32 %s22, 2
      %s35 = sadd.s32 1, %s30
      %p36 = scmp.ge.s32.totalorder %s35, 2
      %s37 = scalar_select %p36, 0, %s35
      %s38 = sadd.s32 1, %s29
      %s39 = scalar_select %p36, %s38, %s29
      %p40 = scmp.ge.s32.totalorder %s39, 2
      %s41 = scalar_select %p40, 0, %s39
      %s42 = ssub.s32 %s29, %s41
      %s43 = ssub.s32 %s30, %s37
      %s44 = sor.u32 %s42, %s43
      %p45 = scmp.eq.s32.totalorder %s44, 0
      %s47 = sadd.s32 %s46, 1
      %s48 = scalar_select %p45, %s46, %s47
      %p51 = pneg %p45
      %p52 = scmp.eq.s32.totalorder %s22, 3
      %p53 = por %p51, %p52
      %p54 = scmp.ne.s32.totalorder %s46, %s49
      %p55 = scmp.eq.s32.totalorder %s22, 0
      %p56 = por %p54, %p55
      %p57 = scmp.ne.s32.totalorder %s46, %s49
      %p58 = scmp.eq.s32.totalorder %s27, 3
      %p59 = por %p57, %p58
      %p60 = scmp.ne.s32.totalorder %s49, %s50
      %p61 = scmp.eq.s32.totalorder %s27, 0
      %p62 = por %p60, %p61
      %p63 = scmp.ne.s32.totalorder %s49, %s50
      %p64 = scmp.eq.s32.totalorder %s28, 3
      %p65 = por %p63, %p64
      %p67 = scmp.ne.s32.totalorder %s50, %s66
      %p68 = scmp.eq.s32.totalorder %s28, 0
      %p69 = por %p67, %p68
      %s70 = ssub.s32 %s30, %s37
      %p71 = scmp.eq.s32.totalorder %s70, 0
      %s73 = sadd.s32 %s72, 1
      %s74 = scalar_select %p71, %s72, %s73
      %p77 = pneg %p71
      %p78 = scmp.eq.s32.totalorder %s22, 3
      %p79 = por %p77, %p78
      %p80 = scmp.ne.s32.totalorder %s72, %s75
      %p81 = scmp.eq.s32.totalorder %s22, 0
      %p82 = por %p80, %p81
      %p83 = scmp.ne.s32.totalorder %s72, %s75
      %p84 = scmp.eq.s32.totalorder %s27, 3
      %p85 = por %p83, %p84
      %p86 = scmp.ne.s32.totalorder %s75, %s76
      %p87 = scmp.eq.s32.totalorder %s27, 0
      %p88 = por %p86, %p87
      %p89 = scmp.ne.s32.totalorder %s75, %s76
      %p90 = scmp.eq.s32.totalorder %s28, 3
      %p91 = por %p89, %p90
      %p93 = scmp.ne.s32.totalorder %s76, %s92
      %p94 = scmp.eq.s32.totalorder %s28, 0
      %p95 = por %p93, %p94
      %s96 = ssub.s32 %s29, %s41
      %p97 = scmp.eq.s32.totalorder %s96, 0
      %s99 = sadd.s32 %s98, 1
      %s100 = scalar_select %p97, %s98, %s99
      %p103 = pneg %p97
      %p104 = scmp.eq.s32.totalorder %s22, 3
      %p105 = por %p103, %p104
      %p106 = scmp.ne.s32.totalorder %s98, %s101
      %p107 = scmp.eq.s32.totalorder %s22, 0
      %p108 = por %p106, %p107
      %p109 = scmp.ne.s32.totalorder %s98, %s101
      %p110 = scmp.eq.s32.totalorder %s27, 3
      %p111 = por %p109, %p110
      %p112 = scmp.ne.s32.totalorder %s101, %s102
      %p113 = scmp.eq.s32.totalorder %s27, 0
      %p114 = por %p112, %p113
      %p115 = scmp.ne.s32.totalorder %s101, %s102
      %p116 = scmp.eq.s32.totalorder %s28, 3
      %p117 = por %p115, %p116
      %p119 = scmp.ne.s32.totalorder %s102, %s118
      %p120 = scmp.eq.s32.totalorder %s28, 0
      %p121 = por %p119, %p120
      %s123 = sadd.s32 %s122, 1
      %p126 = scmp.eq.s32.totalorder %s22, 3
      %p127 = scmp.ne.s32.totalorder %s122, %s124
      %p128 = scmp.eq.s32.totalorder %s22, 0
      %p129 = por %p127, %p128
      %p130 = scmp.ne.s32.totalorder %s122, %s124
      %p131 = scmp.eq.s32.totalorder %s27, 3
      %p132 = por %p130, %p131
      %p133 = scmp.ne.s32.totalorder %s124, %s125
      %p134 = scmp.eq.s32.totalorder %s27, 0
      %p135 = por %p133, %p134
      %p136 = scmp.ne.s32.totalorder %s124, %s125
      %p137 = scmp.eq.s32.totalorder %s28, 3
      %p138 = por %p136, %p137
      %p140 = scmp.ne.s32.totalorder %s125, %s139
      %p141 = scmp.eq.s32.totalorder %s28, 0
      %p142 = por %p140, %p141
      %s144 = sadd.s32 %s143, 1
      %p147 = scmp.eq.s32.totalorder %s22, 3
      %p148 = scmp.ne.s32.totalorder %s143, %s145
      %p149 = scmp.eq.s32.totalorder %s22, 0
      %p150 = por %p148, %p149
      %p151 = scmp.ne.s32.totalorder %s143, %s145
      %p152 = scmp.eq.s32.totalorder %s27, 3
      %p153 = por %p151, %p152
      %p154 = scmp.ne.s32.totalorder %s145, %s146
      %p155 = scmp.eq.s32.totalorder %s27, 0
      %p156 = por %p154, %p155
      %p157 = scmp.ne.s32.totalorder %s145, %s146
      %p158 = scmp.eq.s32.totalorder %s28, 3
      %p159 = por %p157, %p158
      %p161 = scmp.ne.s32.totalorder %s146, %s160
      %p162 = scmp.eq.s32.totalorder %s28, 0
      %p163 = por %p161, %p162
      %s165 = sadd.s32 %s164, 1
      %p168 = scmp.eq.s32.totalorder %s22, 3
      %p169 = scmp.ne.s32.totalorder %s164, %s166
      %p170 = scmp.eq.s32.totalorder %s22, 0
      %p171 = por %p169, %p170
      %p172 = scmp.ne.s32.totalorder %s164, %s166
      %p173 = scmp.eq.s32.totalorder %s27, 3
      %p174 = por %p172, %p173
      %p175 = scmp.ne.s32.totalorder %s166, %s167
      %p176 = scmp.eq.s32.totalorder %s27, 0
      %p177 = por %p175, %p176
      %p178 = scmp.ne.s32.totalorder %s166, %s167
      %p179 = scmp.eq.s32.totalorder %s28, 3
      %p180 = por %p178, %p179
      %p182 = scmp.ne.s32.totalorder %s167, %s181
      %p183 = scmp.eq.s32.totalorder %s28, 0
      %p184 = por %p182, %p183
      %s185 = ssub.s32 %s29, %s41
      %p186 = scmp.eq.s32.totalorder %s185, 0
      %s188 = sadd.s32 %s187, 1
      %s189 = scalar_select %p186, %s187, %s188
      %p192 = pneg %p186
      %p193 = scmp.eq.s32.totalorder %s22, 3
      %p194 = por %p192, %p193
      %p195 = scmp.ne.s32.totalorder %s187, %s190
      %p196 = scmp.eq.s32.totalorder %s22, 0
      %p197 = por %p195, %p196
      %p198 = scmp.ne.s32.totalorder %s187, %s190
      %p199 = scmp.eq.s32.totalorder %s27, 3
      %p200 = por %p198, %p199
      %p201 = scmp.ne.s32.totalorder %s190, %s191
      %p202 = scmp.eq.s32.totalorder %s27, 0
      %p203 = por %p201, %p202
      %p204 = scmp.ne.s32.totalorder %s190, %s191
      %p205 = scmp.eq.s32.totalorder %s28, 3
      %p206 = por %p204, %p205
      %p208 = scmp.ne.s32.totalorder %s191, %s207
      %p209 = scmp.eq.s32.totalorder %s28, 0
      %p210 = por %p208, %p209
      %p211 = scmp.le.s32.totalorder 1, %s22
      %p212 = scmp.lt.s32.totalorder %s22, 5
      %p213 = pnand %p211, %p212
      %p214 = pneg %p213
      // Predicated region
      $region9: #{tpu_custom_call.1} parent=5 // pred_check
        _
      $region10: #{tpu_custom_call.1} parent=5 // pred_check_branch
        %216 = sbr.rel (%p213) target = $region12
      $region11: #{tpu_custom_call.1} parent=5 // pred_region
        %s217 = ssub.s32 %s22, 1
        // Predicated region
        $region13: #{tpu_custom_call.1} parent=11 // pred_check
          %p218 = pneg %p135
        $region14: #{tpu_custom_call.1} parent=11 // pred_check_branch
          %220 = sbr.rel (%p218) target = $region16
        $region15: #{tpu_custom_call.1} parent=11 // pred_region
          %s222 = ssub.s32 1024, 1024
          %223 = vsyncadd [#allocation10], %s222
          %s224 = sshll.u32 [#allocation9], 4
          %s225 = int_to_ptr.vmem [resolvable:$true] %s224
          %230 = dma.hbm_to_vmem [thread:$0]  %s3, 1024, %s225, [#allocation10], 64, 64, 4
        $region16: #{tpu_custom_call.1} parent=11 // pred_fallthru
          _
        // Predicated region
        $region17: #{tpu_custom_call.1} parent=11 // pred_check
          %p231 = pneg %p156
        $region18: #{tpu_custom_call.1} parent=11 // pred_check_branch
          %233 = sbr.rel (%p231) target = $region20
        $region19: #{tpu_custom_call.1} parent=11 // pred_region
          %s235 = ssub.s32 1024, 1024
          %236 = vsyncadd [#allocation10], %s235
          %s237 = sshll.u32 [#allocation11], 4
          %s238 = int_to_ptr.vmem [resolvable:$true] %s237
          %243 = dma.hbm_to_vmem [thread:$0]  %s4, 1024, %s238, [#allocation10], 64, 64, 4
        $region20: #{tpu_custom_call.1} parent=11 // pred_fallthru
          _
        // Predicated region
        $region21: #{tpu_custom_call.1} parent=11 // pred_check
          %p244 = pneg %p177
        $region22: #{tpu_custom_call.1} parent=11 // pred_check_branch
          %246 = sbr.rel (%p244) target = $region24
        $region23: #{tpu_custom_call.1} parent=11 // pred_region
          _
        $region24: #{tpu_custom_call.1} parent=11 // pred_fallthru
          _
      $region12: #{tpu_custom_call.1} parent=5 // pred_fallthru
        _
      %p247 = scmp.lt.s32.totalorder %s22, 4
      // Predicated region
      $region25: #{tpu_custom_call.1} parent=5 // pred_check
        %p248 = pneg %p247
      $region26: #{tpu_custom_call.1} parent=5 // pred_check_branch
        %250 = sbr.rel (%p248) target = $region28
      $region27: #{tpu_custom_call.1} parent=5 // pred_region
        // Predicated region
        $region29: #{tpu_custom_call.1} parent=27 // pred_check
          %p251 = pneg %p56
        $region30: #{tpu_custom_call.1} parent=27 // pred_check_branch
          %253 = sbr.rel (%p251) target = $region32
        $region31: #{tpu_custom_call.1} parent=27 // pred_region
          %s254 = sand.u32 %s46, 1
          %s255 = scalar_lea.sflag [#allocation4], %s254
          %s256 = sand.u32 %s46, 1
          %s257 = smul.addr %s256, 128
          %s258 = scalar_lea.vmem [#allocation3], %s257
          %s259 = smul.u32 16, %s29
          %s260 = smul.u32 2, %s30
          %s262 = ssub.s32 2048, 2048
          %263 = vsyncadd %s255, %s262
          %s264 = smul.addr %s259, 4
          %s265 = sadd.s32 %s260, %s264
          %s266 = smul.addr %s265, 64
          %s267 = scalar_lea.hbm %s0, %s266
          %s268 = sshll.u32 %s258, 4
          %s269 = int_to_ptr.vmem [resolvable:$true] %s268
          %274 = dma.hbm_to_vmem [thread:$0]  %s267, 2048, %s269, %s255, 256, 128, 8
        $region32: #{tpu_custom_call.1} parent=27 // pred_fallthru
          _
        // Predicated region
        $region33: #{tpu_custom_call.1} parent=27 // pred_check
          %p275 = pneg %p82
        $region34: #{tpu_custom_call.1} parent=27 // pred_check_branch
          %277 = sbr.rel (%p275) target = $region36
        $region35: #{tpu_custom_call.1} parent=27 // pred_region
          %s278 = sand.u32 %s22, 1
          %s279 = scalar_lea.sflag [#allocation7], %s278
          %s280 = sand.u32 %s72, 1
          %s281 = smul.addr %s280, 128
          %s282 = scalar_lea.vmem [#allocation6], %s281
          %s283 = smul.u32 32, %s30
          %s285 = ssub.s32 2048, 2048
          %286 = vsyncadd %s279, %s285
          %s287 = smul.addr %s283, 64
          %s288 = scalar_lea.hbm %s1, %s287
          %s289 = sshll.u32 %s282, 4
          %s290 = int_to_ptr.vmem [resolvable:$true] %s289
          %295 = dma.hbm_to_vmem [thread:$0]  %s288, 2048, %s290, %s279, 64, 64, 4
        $region36: #{tpu_custom_call.1} parent=27 // pred_fallthru
          _
        // Predicated region
        $region37: #{tpu_custom_call.1} parent=27 // pred_check
          %p296 = pneg %p108
        $region38: #{tpu_custom_call.1} parent=27 // pred_check_branch
          %298 = sbr.rel (%p296) target = $region40
        $region39: #{tpu_custom_call.1} parent=27 // pred_region
          %s299 = sand.u32 %s22, 1
          %s300 = scalar_lea.sflag [#allocation7], %s299
          %s301 = sand.u32 %s98, 1
          %s302 = smul.addr %s301, 64
          %s303 = scalar_lea.vmem [#allocation8], %s302
          %s304 = smul.u32 16, %s29
          %s306 = ssub.s32 1024, 1024
          %307 = vsyncadd %s300, %s306
          %s308 = smul.addr %s304, 64
          %s309 = scalar_lea.hbm %s2, %s308
          %s310 = sshll.u32 %s303, 4
          %s311 = int_to_ptr.vmem [resolvable:$true] %s310
          %316 = dma.hbm_to_vmem [thread:$0]  %s309, 1024, %s311, %s300, 64, 64, 4
        $region40: #{tpu_custom_call.1} parent=27 // pred_fallthru
          _
      $region28: #{tpu_custom_call.1} parent=5 // pred_fallthru
        _
      %p317 = scmp.le.s32.totalorder 1, %s22
      %p318 = scmp.lt.s32.totalorder %s22, 5
      %p319 = pnand %p317, %p318
      %p320 = pneg %p319
      // Predicated region
      $region41: #{tpu_custom_call.1} parent=5 // pred_check
        _
      $region42: #{tpu_custom_call.1} parent=5 // pred_check_branch
        %322 = sbr.rel (%p319) target = $region44
      $region43: #{tpu_custom_call.1} parent=5 // pred_region
        %s323 = ssub.s32 %s22, 1
        %s324 = sand.u32 %s49, 1
        %s325 = scalar_lea.sflag [#allocation4], %s324
        %s326 = sand.u32 %s49, 1
        %s327 = smul.addr %s326, 128
        %s328 = scalar_lea.vmem [#allocation3], %s327
        // Predicated region
        $region45: #{tpu_custom_call.1} parent=43 // pred_check
          %p329 = pneg %p62
        $region46: #{tpu_custom_call.1} parent=43 // pred_check_branch
          %331 = sbr.rel (%p329) target = $region48
        $region47: #{tpu_custom_call.1} parent=43 // pred_region
          %332 = dma.done %s325, 2048
        $region48: #{tpu_custom_call.1} parent=43 // pred_fallthru
          _
        %s333 = sand.u32 %s27, 1
        %s334 = scalar_lea.sflag [#allocation7], %s333
        %s335 = sand.u32 %s75, 1
        %s336 = smul.addr %s335, 128
        %s337 = scalar_lea.vmem [#allocation6], %s336
        // Predicated region
        $region49: #{tpu_custom_call.1} parent=43 // pred_check
          %p338 = pneg %p88
        $region50: #{tpu_custom_call.1} parent=43 // pred_check_branch
          %340 = sbr.rel (%p338) target = $region52
        $region51: #{tpu_custom_call.1} parent=43 // pred_region
          %341 = dma.done %s334, 2048
        $region52: #{tpu_custom_call.1} parent=43 // pred_fallthru
          _
        %s342 = sand.u32 %s27, 1
        %s343 = scalar_lea.sflag [#allocation7], %s342
        %s344 = sand.u32 %s101, 1
        %s345 = smul.addr %s344, 64
        %s346 = scalar_lea.vmem [#allocation8], %s345
        // Predicated region
        $region53: #{tpu_custom_call.1} parent=43 // pred_check
          %p347 = pneg %p114
        $region54: #{tpu_custom_call.1} parent=43 // pred_check_branch
          %349 = sbr.rel (%p347) target = $region56
        $region55: #{tpu_custom_call.1} parent=43 // pred_region
          %350 = dma.done %s343, 1024
        $region56: #{tpu_custom_call.1} parent=43 // pred_fallthru
          _
        // Predicated region
        $region57: #{tpu_custom_call.1} parent=43 // pred_check
          %p351 = pneg %p135
        $region58: #{tpu_custom_call.1} parent=43 // pred_check_branch
          %353 = sbr.rel (%p351) target = $region60
        $region59: #{tpu_custom_call.1} parent=43 // pred_region
          %354 = dma.done [#allocation10], 1024
        $region60: #{tpu_custom_call.1} parent=43 // pred_fallthru
          _
        // Predicated region
        $region61: #{tpu_custom_call.1} parent=43 // pred_check
          %p355 = pneg %p156
        $region62: #{tpu_custom_call.1} parent=43 // pred_check_branch
          %357 = sbr.rel (%p355) target = $region64
        $region63: #{tpu_custom_call.1} parent=43 // pred_region
          %358 = dma.done [#allocation10], 1024
        $region64: #{tpu_custom_call.1} parent=43 // pred_fallthru
          _
        %s359 = sand.u32 %s49, 1
        %s360 = scalar_lea.sflag [#allocation4], %s359
        %s361 = sand.u32 %s49, 1
        %s362 = smul.addr %s361, 128
        %s363 = scalar_lea.vmem [#allocation3], %s362
        %p364 = pneg %p62
        %p365 = pneg %p59
        %s366 = sand.u32 %s27, 1
        %s367 = scalar_lea.sflag [#allocation7], %s366
        %s368 = sand.u32 %s75, 1
        %s369 = smul.addr %s368, 128
        %s370 = scalar_lea.vmem [#allocation6], %s369
        %p371 = pneg %p88
        %p372 = pneg %p85
        %s373 = sand.u32 %s27, 1
        %s374 = scalar_lea.sflag [#allocation7], %s373
        %s375 = sand.u32 %s101, 1
        %s376 = smul.addr %s375, 64
        %s377 = scalar_lea.vmem [#allocation8], %s376
        %p378 = pneg %p114
        %p379 = pneg %p111
        %p380 = pneg %p135
        %p381 = pneg %p132
        %p382 = pneg %p156
        %p383 = pneg %p153
        %p384 = pneg %p177
        %p385 = pneg %p174
        %p386 = pneg %p203
        %p387 = pneg %p200
        %s388 = sand.u32 %s190, 1
        %s389 = scalar_lea.sflag [#allocation5], %s388
        %s390 = sand.u32 %s190, 1
        %s391 = smul.addr %s390, 64
        %s392 = scalar_lea.vmem [#allocation12], %s391
        %s393 = smul.u32 16, %s31
        %s394 = smul.u32 2, %s32
        %s395 = smul.u32 32, %s32
        %s396 = smul.u32 16, %s31
        %s397 = smul.u32 16, %s31
        %p399 = scmp.eq.s32.totalorder %s32, 0
        // Predicated region
        $region65: #{tpu_custom_call.1} parent=43 // pred_check
          %p400 = pneg %p399
        $region66: #{tpu_custom_call.1} parent=43 // pred_check_branch
          %402 = sbr.rel (%p400) target = $region68
        $region67: #{tpu_custom_call.1} parent=43 // pred_region
          %403 = vst [vmem:[#allocation2] sm:$0xff] 0.0
          %404 = vst [vmem:[#allocation2 + $0x8] sm:$0xff] 0.0
          %405 = vst [vmem:[#allocation2 + $0x10] sm:$0xff] 0.0
          %406 = vst [vmem:[#allocation2 + $0x18] sm:$0xff] 0.0
          %407 = vst [vmem:[#allocation2 + $0x20] sm:$0xff] 0.0
          %408 = vst [vmem:[#allocation2 + $0x28] sm:$0xff] 0.0
          %409 = vst [vmem:[#allocation2 + $0x30] sm:$0xff] 0.0
          %410 = vst [vmem:[#allocation2 + $0x38] sm:$0xff] 0.0
          %411 = vst [vmem:[#allocation2 + $0x40] sm:$0xff] 0.0
          %412 = vst [vmem:[#allocation2 + $0x48] sm:$0xff] 0.0
          %413 = vst [vmem:[#allocation2 + $0x50] sm:$0xff] 0.0
          %414 = vst [vmem:[#allocation2 + $0x58] sm:$0xff] 0.0
          %415 = vst [vmem:[#allocation2 + $0x60] sm:$0xff] 0.0
          %416 = vst [vmem:[#allocation2 + $0x68] sm:$0xff] 0.0
          %417 = vst [vmem:[#allocation2 + $0x70] sm:$0xff] 0.0
          %418 = vst [vmem:[#allocation2 + $0x78] sm:$0xff] 0.0
        $region68: #{tpu_custom_call.1} parent=43 // pred_fallthru
          _
        %v419 = vld [vmem:[#allocation2] sm:$0xff]
        %v420 = vld [vmem:[#allocation2 + $0x8] sm:$0xff]
        %v421 = vld [vmem:[#allocation2 + $0x10] sm:$0xff]
        %v422 = vld [vmem:[#allocation2 + $0x18] sm:$0xff]
        %v423 = vld [vmem:[#allocation2 + $0x20] sm:$0xff]
        %v424 = vld [vmem:[#allocation2 + $0x28] sm:$0xff]
        %v425 = vld [vmem:[#allocation2 + $0x30] sm:$0xff]
        %v426 = vld [vmem:[#allocation2 + $0x38] sm:$0xff]
        %v427 = vld [vmem:[#allocation2 + $0x40] sm:$0xff]
        %v428 = vld [vmem:[#allocation2 + $0x48] sm:$0xff]
        %v429 = vld [vmem:[#allocation2 + $0x50] sm:$0xff]
        %v430 = vld [vmem:[#allocation2 + $0x58] sm:$0xff]
        %v431 = vld [vmem:[#allocation2 + $0x60] sm:$0xff]
        %v432 = vld [vmem:[#allocation2 + $0x68] sm:$0xff]
        %v433 = vld [vmem:[#allocation2 + $0x70] sm:$0xff]
        %v434 = vld [vmem:[#allocation2 + $0x78] sm:$0xff]
        %v435 = vld [vmem:[%s328] sm:$0xff]
        %v436 = vld [vmem:[%s328 + $0x8] sm:$0xff]
        %v437 = vld [vmem:[%s328 + $0x10] sm:$0xff]
        %v438 = vld [vmem:[%s328 + $0x18] sm:$0xff]
        %v439 = vld [vmem:[%s328 + $0x20] sm:$0xff]
        %v440 = vld [vmem:[%s328 + $0x28] sm:$0xff]
        %v441 = vld [vmem:[%s328 + $0x30] sm:$0xff]
        %v442 = vld [vmem:[%s328 + $0x38] sm:$0xff]
        %v443 = vld [vmem:[%s328 + $0x40] sm:$0xff]
        %v444 = vld [vmem:[%s328 + $0x48] sm:$0xff]
        %v445 = vld [vmem:[%s328 + $0x50] sm:$0xff]
        %v446 = vld [vmem:[%s328 + $0x58] sm:$0xff]
        %v447 = vld [vmem:[%s328 + $0x60] sm:$0xff]
        %v448 = vld [vmem:[%s328 + $0x68] sm:$0xff]
        %v449 = vld [vmem:[%s328 + $0x70] sm:$0xff]
        %v450 = vld [vmem:[%s328 + $0x78] sm:$0xff]
        %v451 = vld [vmem:[%s337] sm:$0xf]
        %v452 = vld [vmem:[%s337 + $0x4] sm:$0xf]
        %v453 = vld [vmem:[%s337 + $0x8] sm:$0xf]
        %v454 = vld [vmem:[%s337 + $0xc] sm:$0xf]
        %v455 = vld [vmem:[%s337 + $0x10] sm:$0xf]
        %v456 = vld [vmem:[%s337 + $0x14] sm:$0xf]
        %v457 = vld [vmem:[%s337 + $0x18] sm:$0xf]
        %v458 = vld [vmem:[%s337 + $0x1c] sm:$0xf]
        %v459 = vld [vmem:[%s337 + $0x20] sm:$0xf]
        %v460 = vld [vmem:[%s337 + $0x24] sm:$0xf]
        %v461 = vld [vmem:[%s337 + $0x28] sm:$0xf]
        %v462 = vld [vmem:[%s337 + $0x2c] sm:$0xf]
        %v463 = vld [vmem:[%s337 + $0x30] sm:$0xf]
        %v464 = vld [vmem:[%s337 + $0x34] sm:$0xf]
        %v465 = vld [vmem:[%s337 + $0x38] sm:$0xf]
        %v466 = vld [vmem:[%s337 + $0x3c] sm:$0xf]
        %v467 = vld [vmem:[%s337 + $0x40] sm:$0xf]
        %v468 = vld [vmem:[%s337 + $0x44] sm:$0xf]
        %v469 = vld [vmem:[%s337 + $0x48] sm:$0xf]
        %v470 = vld [vmem:[%s337 + $0x4c] sm:$0xf]
        %v471 = vld [vmem:[%s337 + $0x50] sm:$0xf]
        %v472 = vld [vmem:[%s337 + $0x54] sm:$0xf]
        %v473 = vld [vmem:[%s337 + $0x58] sm:$0xf]
        %v474 = vld [vmem:[%s337 + $0x5c] sm:$0xf]
        %v475 = vld [vmem:[%s337 + $0x60] sm:$0xf]
        %v476 = vld [vmem:[%s337 + $0x64] sm:$0xf]
        %v477 = vld [vmem:[%s337 + $0x68] sm:$0xf]
        %v478 = vld [vmem:[%s337 + $0x6c] sm:$0xf]
        %v479 = vld [vmem:[%s337 + $0x70] sm:$0xf]
        %v480 = vld [vmem:[%s337 + $0x74] sm:$0xf]
        %v481 = vld [vmem:[%s337 + $0x78] sm:$0xf]
        %v482 = vld [vmem:[%s337 + $0x7c] sm:$0xf]
        %v499 = vunpack.c.l.b16 %v435
        %v500 = vunpack.c.h.b16 %v435
        %v501 = vunpack.c.l.b16 %v436
        %v502 = vunpack.c.h.b16 %v436
        %v503 = vunpack.c.l.b16 %v437
        %v504 = vunpack.c.h.b16 %v437
        %v505 = vunpack.c.l.b16 %v438
        %v506 = vunpack.c.h.b16 %v438
        %v507 = vunpack.c.l.b16 %v439
        %v508 = vunpack.c.h.b16 %v439
        %v509 = vunpack.c.l.b16 %v440
        %v510 = vunpack.c.h.b16 %v440
        %v511 = vunpack.c.l.b16 %v441
        %v512 = vunpack.c.h.b16 %v441
        %v513 = vunpack.c.l.b16 %v442
        %v514 = vunpack.c.h.b16 %v442
        %v515 = vunpack.c.l.b16 %v443
        %v516 = vunpack.c.h.b16 %v443
        %v517 = vunpack.c.l.b16 %v444
        %v518 = vunpack.c.h.b16 %v444
        %v519 = vunpack.c.l.b16 %v445
        %v520 = vunpack.c.h.b16 %v445
        %v521 = vunpack.c.l.b16 %v446
        %v522 = vunpack.c.h.b16 %v446
        %v523 = vunpack.c.l.b16 %v447
        %v524 = vunpack.c.h.b16 %v447
        %v525 = vunpack.c.l.b16 %v448
        %v526 = vunpack.c.h.b16 %v448
        %v527 = vunpack.c.l.b16 %v449
        %v528 = vunpack.c.h.b16 %v449
        %v529 = vunpack.c.l.b16 %v450
        %v530 = vunpack.c.h.b16 %v450
        %v531 = vpack.c.b16 %v501, %v499
        %v532 = vpack.c.b16 %v502, %v500
        %v533 = vpack.c.b16 %v505, %v503
        %v534 = vpack.c.b16 %v506, %v504
        %v535 = vpack.c.b16 %v509, %v507
        %v536 = vpack.c.b16 %v510, %v508
        %v537 = vpack.c.b16 %v513, %v511
        %v538 = vpack.c.b16 %v514, %v512
        %v539 = vpack.c.b16 %v517, %v515
        %v540 = vpack.c.b16 %v518, %v516
        %v541 = vpack.c.b16 %v521, %v519
        %v542 = vpack.c.b16 %v522, %v520
        %v543 = vpack.c.b16 %v525, %v523
        %v544 = vpack.c.b16 %v526, %v524
        %v545 = vpack.c.b16 %v529, %v527
        %v546 = vpack.c.b16 %v530, %v528
        %v595 = vunpack.c.l.b16 %v451
        %v596 = vunpack.c.l.b16 %v452
        %v597 = vunpack.c.l.b16 %v453
        %v598 = vunpack.c.l.b16 %v454
        %v599 = vunpack.c.l.b16 %v455
        %v600 = vunpack.c.l.b16 %v456
        %v601 = vunpack.c.l.b16 %v457
        %v602 = vunpack.c.l.b16 %v458
        %v603 = vunpack.c.l.b16 %v459
        %v604 = vunpack.c.l.b16 %v460
        %v605 = vunpack.c.l.b16 %v461
        %v606 = vunpack.c.l.b16 %v462
        %v607 = vunpack.c.l.b16 %v463
        %v608 = vunpack.c.l.b16 %v464
        %v609 = vunpack.c.l.b16 %v465
        %v610 = vunpack.c.l.b16 %v466
        %v611 = vunpack.c.l.b16 %v467
        %v612 = vunpack.c.l.b16 %v468
        %v613 = vunpack.c.l.b16 %v469
        %v614 = vunpack.c.l.b16 %v470
        %v615 = vunpack.c.l.b16 %v471
        %v616 = vunpack.c.l.b16 %v472
        %v617 = vunpack.c.l.b16 %v473
        %v618 = vunpack.c.l.b16 %v474
        %v619 = vunpack.c.l.b16 %v475
        %v620 = vunpack.c.l.b16 %v476
        %v621 = vunpack.c.l.b16 %v477
        %v622 = vunpack.c.l.b16 %v478
        %v623 = vunpack.c.l.b16 %v479
        %v624 = vunpack.c.l.b16 %v480
        %v625 = vunpack.c.l.b16 %v481
        %v626 = vunpack.c.l.b16 %v482
        %v627 = vpack.c.b16 %v596, %v595
        %v628 = vpack.c.b16 %v598, %v597
        %v629 = vpack.c.b16 %v600, %v599
        %v630 = vpack.c.b16 %v602, %v601
        %v631 = vpack.c.b16 %v604, %v603
        %v632 = vpack.c.b16 %v606, %v605
        %v633 = vpack.c.b16 %v608, %v607
        %v634 = vpack.c.b16 %v610, %v609
        %v635 = vpack.c.b16 %v612, %v611
        %v636 = vpack.c.b16 %v614, %v613
        %v637 = vpack.c.b16 %v616, %v615
        %v638 = vpack.c.b16 %v618, %v617
        %v639 = vpack.c.b16 %v620, %v619
        %v640 = vpack.c.b16 %v622, %v621
        %v641 = vpack.c.b16 %v624, %v623
        %v642 = vpack.c.b16 %v626, %v625
        %659 = vmatprep.subr.bf16.mxu0 0
        %660 = vmatpush1.bf16.msra.mxu0 %v627
        %661 = vmatprep.subr.bf16.mxu0 0
        %662 = vmatpush1.bf16.msra.mxu0 %v628
        %663 = vmatprep.subr.bf16.mxu0 0
        %664 = vmatpush1.bf16.msra.mxu0 %v629
        %665 = vmatprep.subr.bf16.mxu0 0
        %666 = vmatpush1.bf16.msra.mxu0 %v630
        %667 = vmatprep.subr.bf16.mxu0 0
        %668 = vmatpush1.bf16.msra.mxu0 %v631
        %669 = vmatprep.subr.bf16.mxu0 0
        %670 = vmatpush1.bf16.msra.mxu0 %v632
        %671 = vmatprep.subr.bf16.mxu0 0
        %672 = vmatpush1.bf16.msra.mxu0 %v633
        %673 = vmatprep.subr.bf16.mxu0 0
        %674 = vmatpush1.bf16.msra.mxu0 %v634
        %675 = vmatprep.subr.bf16.mxu0 0
        %676 = vmatpush1.bf16.msra.mxu0 %v635
        %677 = vmatprep.subr.bf16.mxu0 0
        %678 = vmatpush1.bf16.msra.mxu0 %v636
        %679 = vmatprep.subr.bf16.mxu0 0
        %680 = vmatpush1.bf16.msra.mxu0 %v637
        %681 = vmatprep.subr.bf16.mxu0 0
        %682 = vmatpush1.bf16.msra.mxu0 %v638
        %683 = vmatprep.subr.bf16.mxu0 0
        %684 = vmatpush1.bf16.msra.mxu0 %v639
        %685 = vmatprep.subr.bf16.mxu0 0
        %686 = vmatpush1.bf16.msra.mxu0 %v640
        %687 = vmatprep.subr.bf16.mxu0 0
        %688 = vmatpush1.bf16.msra.mxu0 %v641
        %689 = vmatprep.subr.bf16.mxu0 0
        %690 = vmatpush1.bf16.msra.mxu0 %v642
        %691 = vmatprep.mubr.bf16.mxu0 %v532
        %692 = vmatmul.mubr.bf16.gmra.mrb[0].mxu0 %v531
        %v693 = vpop.f32.mrb[0].mxu0
        %v694 = vadd.f32 0.0, %v693
        %v695 = vpop.f32.mrb[0].mxu0
        %v696 = vpop.f32.mrb[0].mxu0
        %v697 = vadd.f32 0.0, %v696
        %v698 = vpop.f32.mrb[0].mxu0
        %699 = vmatprep.mubr.bf16.mxu0 %v534
        %700 = vmatmul.mubr.bf16.gmra.mrb[0].mxu0 %v533
        %v701 = vpop.f32.mrb[0].mxu0
        %v702 = vadd.f32 0.0, %v701
        %v703 = vpop.f32.mrb[0].mxu0
        %v704 = vpop.f32.mrb[0].mxu0
        %v705 = vadd.f32 0.0, %v704
        %v706 = vpop.f32.mrb[0].mxu0
        %707 = vmatprep.mubr.bf16.mxu0 %v536
        %708 = vmatmul.mubr.bf16.gmra.mrb[0].mxu0 %v535
        %v709 = vpop.f32.mrb[0].mxu0
        %v710 = vadd.f32 0.0, %v709
        %v711 = vpop.f32.mrb[0].mxu0
        %v712 = vpop.f32.mrb[0].mxu0
        %v713 = vadd.f32 0.0, %v712
        %v714 = vpop.f32.mrb[0].mxu0
        %715 = vmatprep.mubr.bf16.mxu0 %v538
        %716 = vmatmul.mubr.bf16.gmra.mrb[0].mxu0 %v537
        %v717 = vpop.f32.mrb[0].mxu0
        %v718 = vadd.f32 0.0, %v717
        %v719 = vpop.f32.mrb[0].mxu0
        %v720 = vpop.f32.mrb[0].mxu0
        %v721 = vadd.f32 0.0, %v720
        %v722 = vpop.f32.mrb[0].mxu0
        %723 = vmatprep.mubr.bf16.mxu0 %v540
        %724 = vmatmul.mubr.bf16.gmra.mrb[0].mxu0 %v539
        %v725 = vpop.f32.mrb[0].mxu0
        %v726 = vadd.f32 0.0, %v725
        %v727 = vpop.f32.mrb[0].mxu0
        %v728 = vpop.f32.mrb[0].mxu0
        %v729 = vadd.f32 0.0, %v728
        %v730 = vpop.f32.mrb[0].mxu0
        %731 = vmatprep.mubr.bf16.mxu0 %v542
        %732 = vmatmul.mubr.bf16.gmra.mrb[0].mxu0 %v541
        %v733 = vpop.f32.mrb[0].mxu0
        %v734 = vadd.f32 0.0, %v733
        %v735 = vpop.f32.mrb[0].mxu0
        %v736 = vpop.f32.mrb[0].mxu0
        %v737 = vadd.f32 0.0, %v736
        %v738 = vpop.f32.mrb[0].mxu0
        %739 = vmatprep.mubr.bf16.mxu0 %v544
        %740 = vmatmul.mubr.bf16.gmra.mrb[0].mxu0 %v543
        %v741 = vpop.f32.mrb[0].mxu0
        %v742 = vadd.f32 0.0, %v741
        %v743 = vpop.f32.mrb[0].mxu0
        %v744 = vpop.f32.mrb[0].mxu0
        %v745 = vadd.f32 0.0, %v744
        %v746 = vpop.f32.mrb[0].mxu0
        %747 = vmatprep.mubr.bf16.mxu0 %v546
        %748 = vmatmul.mubr.bf16.gmra.mrb[0].mxu0 %v545
        %v749 = vpop.f32.mrb[0].mxu0
        %v750 = vadd.f32 0.0, %v749
        %v751 = vpop.f32.mrb[0].mxu0
        %v752 = vpop.f32.mrb[0].mxu0
        %v753 = vadd.f32 0.0, %v752
        %v754 = vpop.f32.mrb[0].mxu0
        %755 = vdwg.mxu0
        %v756 = vadd.f32 %v419, %v694
        %v757 = vadd.f32 %v420, %v697
        %v758 = vadd.f32 %v421, %v702
        %v759 = vadd.f32 %v422, %v705
        %v760 = vadd.f32 %v423, %v710
        %v761 = vadd.f32 %v424, %v713
        %v762 = vadd.f32 %v425, %v718
        %v763 = vadd.f32 %v426, %v721
        %v764 = vadd.f32 %v427, %v726
        %v765 = vadd.f32 %v428, %v729
        %v766 = vadd.f32 %v429, %v734
        %v767 = vadd.f32 %v430, %v737
        %v768 = vadd.f32 %v431, %v742
        %v769 = vadd.f32 %v432, %v745
        %v770 = vadd.f32 %v433, %v750
        %v771 = vadd.f32 %v434, %v753
        %772 = vst [vmem:[#allocation2] sm:$0xff] %v756
        %773 = vst [vmem:[#allocation2 + $0x8] sm:$0xff] %v757
        %774 = vst [vmem:[#allocation2 + $0x10] sm:$0xff] %v758
        %775 = vst [vmem:[#allocation2 + $0x18] sm:$0xff] %v759
        %776 = vst [vmem:[#allocation2 + $0x20] sm:$0xff] %v760
        %777 = vst [vmem:[#allocation2 + $0x28] sm:$0xff] %v761
        %778 = vst [vmem:[#allocation2 + $0x30] sm:$0xff] %v762
        %779 = vst [vmem:[#allocation2 + $0x38] sm:$0xff] %v763
        %780 = vst [vmem:[#allocation2 + $0x40] sm:$0xff] %v764
        %781 = vst [vmem:[#allocation2 + $0x48] sm:$0xff] %v765
        %782 = vst [vmem:[#allocation2 + $0x50] sm:$0xff] %v766
        %783 = vst [vmem:[#allocation2 + $0x58] sm:$0xff] %v767
        %784 = vst [vmem:[#allocation2 + $0x60] sm:$0xff] %v768
        %785 = vst [vmem:[#allocation2 + $0x68] sm:$0xff] %v769
        %786 = vst [vmem:[#allocation2 + $0x70] sm:$0xff] %v770
        %787 = vst [vmem:[#allocation2 + $0x78] sm:$0xff] %v771
        %p788 = scmp.eq.s32.totalorder %s32, 1
        // Predicated region
        $region69: #{tpu_custom_call.1} parent=43 // pred_check
          %p789 = pneg %p788
        $region70: #{tpu_custom_call.1} parent=43 // pred_check_branch
          %791 = sbr.rel (%p789) target = $region72
        $region71: #{tpu_custom_call.1} parent=43 // pred_region
          %v792 = vld [vmem:[%s346] sm:$0xf]
          %v793 = vld [vmem:[%s346 + $0x4] sm:$0xf]
          %v794 = vld [vmem:[%s346 + $0x8] sm:$0xf]
          %v795 = vld [vmem:[%s346 + $0xc] sm:$0xf]
          %v796 = vld [vmem:[%s346 + $0x10] sm:$0xf]
          %v797 = vld [vmem:[%s346 + $0x14] sm:$0xf]
          %v798 = vld [vmem:[%s346 + $0x18] sm:$0xf]
          %v799 = vld [vmem:[%s346 + $0x1c] sm:$0xf]
          %v800 = vld [vmem:[%s346 + $0x20] sm:$0xf]
          %v801 = vld [vmem:[%s346 + $0x24] sm:$0xf]
          %v802 = vld [vmem:[%s346 + $0x28] sm:$0xf]
          %v803 = vld [vmem:[%s346 + $0x2c] sm:$0xf]
          %v804 = vld [vmem:[%s346 + $0x30] sm:$0xf]
          %v805 = vld [vmem:[%s346 + $0x34] sm:$0xf]
          %v806 = vld [vmem:[%s346 + $0x38] sm:$0xf]
          %v807 = vld [vmem:[%s346 + $0x3c] sm:$0xf]
          %v808 = vld [vmem:[#allocation9] sm:$0xf]
          %v809 = vld [vmem:[#allocation9 + $0x4] sm:$0xf]
          %v810 = vld [vmem:[#allocation9 + $0x8] sm:$0xf]
          %v811 = vld [vmem:[#allocation9 + $0xc] sm:$0xf]
          %v812 = vld [vmem:[#allocation9 + $0x10] sm:$0xf]
          %v813 = vld [vmem:[#allocation9 + $0x14] sm:$0xf]
          %v814 = vld [vmem:[#allocation9 + $0x18] sm:$0xf]
          %v815 = vld [vmem:[#allocation9 + $0x1c] sm:$0xf]
          %v816 = vld [vmem:[#allocation9 + $0x20] sm:$0xf]
          %v817 = vld [vmem:[#allocation9 + $0x24] sm:$0xf]
          %v818 = vld [vmem:[#allocation9 + $0x28] sm:$0xf]
          %v819 = vld [vmem:[#allocation9 + $0x2c] sm:$0xf]
          %v820 = vld [vmem:[#allocation9 + $0x30] sm:$0xf]
          %v821 = vld [vmem:[#allocation9 + $0x34] sm:$0xf]
          %v822 = vld [vmem:[#allocation9 + $0x38] sm:$0xf]
          %v823 = vld [vmem:[#allocation9 + $0x3c] sm:$0xf]
          %v824 = vld [vmem:[#allocation2] sm:$0xff]
          %v825 = vld [vmem:[#allocation2 + $0x8] sm:$0xff]
          %v826 = vld [vmem:[#allocation2 + $0x10] sm:$0xff]
          %v827 = vld [vmem:[#allocation2 + $0x18] sm:$0xff]
          %v828 = vld [vmem:[#allocation2 + $0x20] sm:$0xff]
          %v829 = vld [vmem:[#allocation2 + $0x28] sm:$0xff]
          %v830 = vld [vmem:[#allocation2 + $0x30] sm:$0xff]
          %v831 = vld [vmem:[#allocation2 + $0x38] sm:$0xff]
          %v832 = vld [vmem:[#allocation2 + $0x40] sm:$0xff]
          %v833 = vld [vmem:[#allocation2 + $0x48] sm:$0xff]
          %v834 = vld [vmem:[#allocation2 + $0x50] sm:$0xff]
          %v835 = vld [vmem:[#allocation2 + $0x58] sm:$0xff]
          %v836 = vld [vmem:[#allocation2 + $0x60] sm:$0xff]
          %v837 = vld [vmem:[#allocation2 + $0x68] sm:$0xff]
          %v838 = vld [vmem:[#allocation2 + $0x70] sm:$0xff]
          %v839 = vld [vmem:[#allocation2 + $0x78] sm:$0xff]
          %v840 = vpack.c.bf16 %v825, %v824
          %v841 = vpack.c.bf16 %v827, %v826
          %v842 = vpack.c.bf16 %v829, %v828
          %v843 = vpack.c.bf16 %v831, %v830
          %v844 = vpack.c.bf16 %v833, %v832
          %v845 = vpack.c.bf16 %v835, %v834
          %v846 = vpack.c.bf16 %v837, %v836
          %v847 = vpack.c.bf16 %v839, %v838
          %v848 = vld [vmem:[#allocation11] sm:$0xf]
          %v849 = vld [vmem:[#allocation11 + $0x4] sm:$0xf]
          %v850 = vld [vmem:[#allocation11 + $0x8] sm:$0xf]
          %v851 = vld [vmem:[#allocation11 + $0xc] sm:$0xf]
          %v852 = vld [vmem:[#allocation11 + $0x10] sm:$0xf]
          %v853 = vld [vmem:[#allocation11 + $0x14] sm:$0xf]
          %v854 = vld [vmem:[#allocation11 + $0x18] sm:$0xf]
          %v855 = vld [vmem:[#allocation11 + $0x1c] sm:$0xf]
          %v856 = vld [vmem:[#allocation11 + $0x20] sm:$0xf]
          %v857 = vld [vmem:[#allocation11 + $0x24] sm:$0xf]
          %v858 = vld [vmem:[#allocation11 + $0x28] sm:$0xf]
          %v859 = vld [vmem:[#allocation11 + $0x2c] sm:$0xf]
          %v860 = vld [vmem:[#allocation11 + $0x30] sm:$0xf]
          %v861 = vld [vmem:[#allocation11 + $0x34] sm:$0xf]
          %v862 = vld [vmem:[#allocation11 + $0x38] sm:$0xf]
          %v863 = vld [vmem:[#allocation11 + $0x3c] sm:$0xf]
          %v880 = vunpack.c.l.b16 %v848
          %v881 = vunpack.c.l.b16 %v849
          %v882 = vunpack.c.l.b16 %v850
          %v883 = vunpack.c.l.b16 %v851
          %v884 = vunpack.c.l.b16 %v852
          %v885 = vunpack.c.l.b16 %v853
          %v886 = vunpack.c.l.b16 %v854
          %v887 = vunpack.c.l.b16 %v855
          %v888 = vunpack.c.l.b16 %v856
          %v889 = vunpack.c.l.b16 %v857
          %v890 = vunpack.c.l.b16 %v858
          %v891 = vunpack.c.l.b16 %v859
          %v892 = vunpack.c.l.b16 %v860
          %v893 = vunpack.c.l.b16 %v861
          %v894 = vunpack.c.l.b16 %v862
          %v895 = vunpack.c.l.b16 %v863
          %v896 = vpack.c.b16 %v881, %v880
          %v897 = vpack.c.b16 %v883, %v882
          %v898 = vpack.c.b16 %v885, %v884
          %v899 = vpack.c.b16 %v887, %v886
          %v900 = vpack.c.b16 %v889, %v888
          %v901 = vpack.c.b16 %v891, %v890
          %v902 = vpack.c.b16 %v893, %v892
          %v903 = vpack.c.b16 %v895, %v894
          %912 = vmatprep.subr.bf16.mxu0 0
          %913 = vmatpush1.bf16.msra.mxu0 %v896
          %914 = vmatprep.subr.bf16.mxu0 0
          %915 = vmatpush1.bf16.msra.mxu0 %v897
          %916 = vmatprep.subr.bf16.mxu0 0
          %917 = vmatpush1.bf16.msra.mxu0 %v898
          %918 = vmatprep.subr.bf16.mxu0 0
          %919 = vmatpush1.bf16.msra.mxu0 %v899
          %920 = vmatprep.subr.bf16.mxu0 0
          %921 = vmatpush1.bf16.msra.mxu0 %v900
          %922 = vmatprep.subr.bf16.mxu0 0
          %923 = vmatpush1.bf16.msra.mxu0 %v901
          %924 = vmatprep.subr.bf16.mxu0 0
          %925 = vmatpush1.bf16.msra.mxu0 %v902
          %926 = vmatprep.subr.bf16.mxu0 0
          %927 = vmatpush1.bf16.msra.mxu0 %v903
          %928 = vmatprep.subr.bf16.mxu0 0
          %929 = vmatpush1.bf16.msra.mxu0 0
          %930 = vmatprep.subr.bf16.mxu0 0
          %931 = vmatpush1.bf16.msra.mxu0 0
          %932 = vmatprep.subr.bf16.mxu0 0
          %933 = vmatpush1.bf16.msra.mxu0 0
          %934 = vmatprep.subr.bf16.mxu0 0
          %935 = vmatpush1.bf16.msra.mxu0 0
          %936 = vmatprep.subr.bf16.mxu0 0
          %937 = vmatpush1.bf16.msra.mxu0 0
          %938 = vmatprep.subr.bf16.mxu0 0
          %939 = vmatpush1.bf16.msra.mxu0 0
          %940 = vmatprep.subr.bf16.mxu0 0
          %941 = vmatpush1.bf16.msra.mxu0 0
          %942 = vmatprep.subr.bf16.mxu0 0
          %943 = vmatpush1.bf16.msra.mxu0 0
          %944 = vmatprep.mubr.bf16.mxu0 0
          %945 = vmatmul.mubr.bf16.gmra.mrb[0].mxu0 %v840
          %v946 = vpop.f32.mrb[0].mxu0
          %v947 = vadd.f32 0.0, %v946
          %v948 = vpop.f32.mrb[0].mxu0
          %v949 = vpop.f32.mrb[0].mxu0
          %v950 = vadd.f32 0.0, %v949
          %v951 = vpop.f32.mrb[0].mxu0
          %952 = vmatprep.mubr.bf16.mxu0 0
          %953 = vmatmul.mubr.bf16.gmra.mrb[0].mxu0 %v841
          %v954 = vpop.f32.mrb[0].mxu0
          %v955 = vadd.f32 0.0, %v954
          %v956 = vpop.f32.mrb[0].mxu0
          %v957 = vpop.f32.mrb[0].mxu0
          %v958 = vadd.f32 0.0, %v957
          %v959 = vpop.f32.mrb[0].mxu0
          %960 = vmatprep.mubr.bf16.mxu0 0
          %961 = vmatmul.mubr.bf16.gmra.mrb[0].mxu0 %v842
          %v962 = vpop.f32.mrb[0].mxu0
          %v963 = vadd.f32 0.0, %v962
          %v964 = vpop.f32.mrb[0].mxu0
          %v965 = vpop.f32.mrb[0].mxu0
          %v966 = vadd.f32 0.0, %v965
          %v967 = vpop.f32.mrb[0].mxu0
          %968 = vmatprep.mubr.bf16.mxu0 0
          %969 = vmatmul.mubr.bf16.gmra.mrb[0].mxu0 %v843
          %v970 = vpop.f32.mrb[0].mxu0
          %v971 = vadd.f32 0.0, %v970
          %v972 = vpop.f32.mrb[0].mxu0
          %v973 = vpop.f32.mrb[0].mxu0
          %v974 = vadd.f32 0.0, %v973
          %v975 = vpop.f32.mrb[0].mxu0
          %976 = vmatprep.mubr.bf16.mxu0 0
          %977 = vmatmul.mubr.bf16.gmra.mrb[0].mxu0 %v844
          %v978 = vpop.f32.mrb[0].mxu0
          %v979 = vadd.f32 0.0, %v978
          %v980 = vpop.f32.mrb[0].mxu0
          %v981 = vpop.f32.mrb[0].mxu0
          %v982 = vadd.f32 0.0, %v981
          %v983 = vpop.f32.mrb[0].mxu0
          %984 = vmatprep.mubr.bf16.mxu0 0
          %985 = vmatmul.mubr.bf16.gmra.mrb[0].mxu0 %v845
          %v986 = vpop.f32.mrb[0].mxu0
          %v987 = vadd.f32 0.0, %v986
          %v988 = vpop.f32.mrb[0].mxu0
          %v989 = vpop.f32.mrb[0].mxu0
          %v990 = vadd.f32 0.0, %v989
          %v991 = vpop.f32.mrb[0].mxu0
          %992 = vmatprep.mubr.bf16.mxu0 0
          %993 = vmatmul.mubr.bf16.gmra.mrb[0].mxu0 %v846
          %v994 = vpop.f32.mrb[0].mxu0
          %v995 = vadd.f32 0.0, %v994
          %v996 = vpop.f32.mrb[0].mxu0
          %v997 = vpop.f32.mrb[0].mxu0
          %v998 = vadd.f32 0.0, %v997
          %v999 = vpop.f32.mrb[0].mxu0
          %1000 = vmatprep.mubr.bf16.mxu0 0
          %1001 = vmatmul.mubr.bf16.gmra.mrb[0].mxu0 %v847
          %v1002 = vpop.f32.mrb[0].mxu0
          %v1003 = vadd.f32 0.0, %v1002
          %v1004 = vpop.f32.mrb[0].mxu0
          %v1005 = vpop.f32.mrb[0].mxu0
          %v1006 = vadd.f32 0.0, %v1005
          %v1007 = vpop.f32.mrb[0].mxu0
          %1008 = vdwg.mxu0
          %v1025 = vunpack.c.l.b16 %v792
          %v1026 = vunpack.c.l.b16 %v793
          %v1027 = vunpack.c.l.b16 %v794
          %v1028 = vunpack.c.l.b16 %v795
          %v1029 = vunpack.c.l.b16 %v796
          %v1030 = vunpack.c.l.b16 %v797
          %v1031 = vunpack.c.l.b16 %v798
          %v1032 = vunpack.c.l.b16 %v799
          %v1033 = vunpack.c.l.b16 %v800
          %v1034 = vunpack.c.l.b16 %v801
          %v1035 = vunpack.c.l.b16 %v802
          %v1036 = vunpack.c.l.b16 %v803
          %v1037 = vunpack.c.l.b16 %v804
          %v1038 = vunpack.c.l.b16 %v805
          %v1039 = vunpack.c.l.b16 %v806
          %v1040 = vunpack.c.l.b16 %v807
          %v1041 = vpack.c.b16 %v1026, %v1025
          %v1042 = vpack.c.b16 %v1028, %v1027
          %v1043 = vpack.c.b16 %v1030, %v1029
          %v1044 = vpack.c.b16 %v1032, %v1031
          %v1045 = vpack.c.b16 %v1034, %v1033
          %v1046 = vpack.c.b16 %v1036, %v1035
          %v1047 = vpack.c.b16 %v1038, %v1037
          %v1048 = vpack.c.b16 %v1040, %v1039
          %v1073 = vunpack.c.l.b16 %v808
          %v1074 = vunpack.c.l.b16 %v809
          %v1075 = vunpack.c.l.b16 %v810
          %v1076 = vunpack.c.l.b16 %v811
          %v1077 = vunpack.c.l.b16 %v812
          %v1078 = vunpack.c.l.b16 %v813
          %v1079 = vunpack.c.l.b16 %v814
          %v1080 = vunpack.c.l.b16 %v815
          %v1081 = vunpack.c.l.b16 %v816
          %v1082 = vunpack.c.l.b16 %v817
          %v1083 = vunpack.c.l.b16 %v818
          %v1084 = vunpack.c.l.b16 %v819
          %v1085 = vunpack.c.l.b16 %v820
          %v1086 = vunpack.c.l.b16 %v821
          %v1087 = vunpack.c.l.b16 %v822
          %v1088 = vunpack.c.l.b16 %v823
          %v1089 = vpack.c.b16 %v1074, %v1073
          %v1090 = vpack.c.b16 %v1076, %v1075
          %v1091 = vpack.c.b16 %v1078, %v1077
          %v1092 = vpack.c.b16 %v1080, %v1079
          %v1093 = vpack.c.b16 %v1082, %v1081
          %v1094 = vpack.c.b16 %v1084, %v1083
          %v1095 = vpack.c.b16 %v1086, %v1085
          %v1096 = vpack.c.b16 %v1088, %v1087
          %1105 = vmatprep.subr.bf16.mxu0 0
          %1106 = vmatpush1.bf16.msra.mxu0 %v1089
          %1107 = vmatprep.subr.bf16.mxu0 0
          %1108 = vmatpush1.bf16.msra.mxu0 %v1090
          %1109 = vmatprep.subr.bf16.mxu0 0
          %1110 = vmatpush1.bf16.msra.mxu0 %v1091
          %1111 = vmatprep.subr.bf16.mxu0 0
          %1112 = vmatpush1.bf16.msra.mxu0 %v1092
          %1113 = vmatprep.subr.bf16.mxu0 0
          %1114 = vmatpush1.bf16.msra.mxu0 %v1093
          %1115 = vmatprep.subr.bf16.mxu0 0
          %1116 = vmatpush1.bf16.msra.mxu0 %v1094
          %1117 = vmatprep.subr.bf16.mxu0 0
          %1118 = vmatpush1.bf16.msra.mxu0 %v1095
          %1119 = vmatprep.subr.bf16.mxu0 0
          %1120 = vmatpush1.bf16.msra.mxu0 %v1096
          %1121 = vmatprep.subr.bf16.mxu0 0
          %1122 = vmatpush1.bf16.msra.mxu0 0
          %1123 = vmatprep.subr.bf16.mxu0 0
          %1124 = vmatpush1.bf16.msra.mxu0 0
          %1125 = vmatprep.subr.bf16.mxu0 0
          %1126 = vmatpush1.bf16.msra.mxu0 0
          %1127 = vmatprep.subr.bf16.mxu0 0
          %1128 = vmatpush1.bf16.msra.mxu0 0
          %1129 = vmatprep.subr.bf16.mxu0 0
          %1130 = vmatpush1.bf16.msra.mxu0 0
          %1131 = vmatprep.subr.bf16.mxu0 0
          %1132 = vmatpush1.bf16.msra.mxu0 0
          %1133 = vmatprep.subr.bf16.mxu0 0
          %1134 = vmatpush1.bf16.msra.mxu0 0
          %1135 = vmatprep.subr.bf16.mxu0 0
          %1136 = vmatpush1.bf16.msra.mxu0 0
          %1137 = vmatprep.mubr.bf16.mxu0 0
          %1138 = vmatmul.mubr.bf16.gmra.mrb[0].mxu0 %v1041
          %v1139 = vpop.f32.mrb[0].mxu0
          %v1140 = vadd.f32 %v947, %v1139
          %v1141 = vpop.f32.mrb[0].mxu0
          %v1142 = vpop.f32.mrb[0].mxu0
          %v1143 = vadd.f32 %v950, %v1142
          %v1144 = vpop.f32.mrb[0].mxu0
          %1145 = vmatprep.mubr.bf16.mxu0 0
          %1146 = vmatmul.mubr.bf16.gmra.mrb[0].mxu0 %v1042
          %v1147 = vpop.f32.mrb[0].mxu0
          %v1148 = vadd.f32 %v955, %v1147
          %v1149 = vpop.f32.mrb[0].mxu0
          %v1150 = vpop.f32.mrb[0].mxu0
          %v1151 = vadd.f32 %v958, %v1150
          %v1152 = vpop.f32.mrb[0].mxu0
          %1153 = vmatprep.mubr.bf16.mxu0 0
          %1154 = vmatmul.mubr.bf16.gmra.mrb[0].mxu0 %v1043
          %v1155 = vpop.f32.mrb[0].mxu0
          %v1156 = vadd.f32 %v963, %v1155
          %v1157 = vpop.f32.mrb[0].mxu0
          %v1158 = vpop.f32.mrb[0].mxu0
          %v1159 = vadd.f32 %v966, %v1158
          %v1160 = vpop.f32.mrb[0].mxu0
          %1161 = vmatprep.mubr.bf16.mxu0 0
          %1162 = vmatmul.mubr.bf16.gmra.mrb[0].mxu0 %v1044
          %v1163 = vpop.f32.mrb[0].mxu0
          %v1164 = vadd.f32 %v971, %v1163
          %v1165 = vpop.f32.mrb[0].mxu0
          %v1166 = vpop.f32.mrb[0].mxu0
          %v1167 = vadd.f32 %v974, %v1166
          %v1168 = vpop.f32.mrb[0].mxu0
          %1169 = vmatprep.mubr.bf16.mxu0 0
          %1170 = vmatmul.mubr.bf16.gmra.mrb[0].mxu0 %v1045
          %v1171 = vpop.f32.mrb[0].mxu0
          %v1172 = vadd.f32 %v979, %v1171
          %v1173 = vpop.f32.mrb[0].mxu0
          %v1174 = vpop.f32.mrb[0].mxu0
          %v1175 = vadd.f32 %v982, %v1174
          %v1176 = vpop.f32.mrb[0].mxu0
          %1177 = vmatprep.mubr.bf16.mxu0 0
          %1178 = vmatmul.mubr.bf16.gmra.mrb[0].mxu0 %v1046
          %v1179 = vpop.f32.mrb[0].mxu0
          %v1180 = vadd.f32 %v987, %v1179
          %v1181 = vpop.f32.mrb[0].mxu0
          %v1182 = vpop.f32.mrb[0].mxu0
          %v1183 = vadd.f32 %v990, %v1182
          %v1184 = vpop.f32.mrb[0].mxu0
          %1185 = vmatprep.mubr.bf16.mxu0 0
          %1186 = vmatmul.mubr.bf16.gmra.mrb[0].mxu0 %v1047
          %v1187 = vpop.f32.mrb[0].mxu0
          %v1188 = vadd.f32 %v995, %v1187
          %v1189 = vpop.f32.mrb[0].mxu0
          %v1190 = vpop.f32.mrb[0].mxu0
          %v1191 = vadd.f32 %v998, %v1190
          %v1192 = vpop.f32.mrb[0].mxu0
          %1193 = vmatprep.mubr.bf16.mxu0 0
          %1194 = vmatmul.mubr.bf16.gmra.mrb[0].mxu0 %v1048
          %v1195 = vpop.f32.mrb[0].mxu0
          %v1196 = vadd.f32 %v1003, %v1195
          %v1197 = vpop.f32.mrb[0].mxu0
          %v1198 = vpop.f32.mrb[0].mxu0
          %v1199 = vadd.f32 %v1006, %v1198
          %v1200 = vpop.f32.mrb[0].mxu0
          %1201 = vdwg.mxu0
          %v1202 = vld [vmem:[%s5] sm:$0x1]
          %v1204 = vlaneseq
          %v1205 = vshrl.u32 %v1204, 7
          %v1206 = vsub.s32 0, %v1205
          %v1207 = vrot.slane %v1202, %v1206
          %v1209 = vadd.f32 %v1140, %v1207
          %v1210 = vadd.f32 %v1143, %v1207
          %v1211 = vadd.f32 %v1148, %v1207
          %v1212 = vadd.f32 %v1151, %v1207
          %v1213 = vadd.f32 %v1156, %v1207
          %v1214 = vadd.f32 %v1159, %v1207
          %v1215 = vadd.f32 %v1164, %v1207
          %v1216 = vadd.f32 %v1167, %v1207
          %v1217 = vadd.f32 %v1172, %v1207
          %v1218 = vadd.f32 %v1175, %v1207
          %v1219 = vadd.f32 %v1180, %v1207
          %v1220 = vadd.f32 %v1183, %v1207
          %v1221 = vadd.f32 %v1188, %v1207
          %v1222 = vadd.f32 %v1191, %v1207
          %v1223 = vadd.f32 %v1196, %v1207
          %v1224 = vadd.f32 %v1199, %v1207
          %v1225 = vmax.f32 %v1209, 0.0
          %v1226 = vmax.f32 %v1210, 0.0
          %v1227 = vmax.f32 %v1211, 0.0
          %v1228 = vmax.f32 %v1212, 0.0
          %v1229 = vmax.f32 %v1213, 0.0
          %v1230 = vmax.f32 %v1214, 0.0
          %v1231 = vmax.f32 %v1215, 0.0
          %v1232 = vmax.f32 %v1216, 0.0
          %v1233 = vmax.f32 %v1217, 0.0
          %v1234 = vmax.f32 %v1218, 0.0
          %v1235 = vmax.f32 %v1219, 0.0
          %v1236 = vmax.f32 %v1220, 0.0
          %v1237 = vmax.f32 %v1221, 0.0
          %v1238 = vmax.f32 %v1222, 0.0
          %v1239 = vmax.f32 %v1223, 0.0
          %v1240 = vmax.f32 %v1224, 0.0
          %v1241 = vpack.c.bf16 %v1226, %v1225
          %v1242 = vpack.c.bf16 %v1228, %v1227
          %v1243 = vpack.c.bf16 %v1230, %v1229
          %v1244 = vpack.c.bf16 %v1232, %v1231
          %v1245 = vpack.c.bf16 %v1234, %v1233
          %v1246 = vpack.c.bf16 %v1236, %v1235
          %v1247 = vpack.c.bf16 %v1238, %v1237
          %v1248 = vpack.c.bf16 %v1240, %v1239
          %v1257 = vunpack.c.l.b16 %v1241
          %v1258 = vunpack.c.h.b16 %v1241
          %v1259 = vunpack.c.l.b16 %v1242
          %v1260 = vunpack.c.h.b16 %v1242
          %v1261 = vunpack.c.l.b16 %v1243
          %v1262 = vunpack.c.h.b16 %v1243
          %v1263 = vunpack.c.l.b16 %v1244
          %v1264 = vunpack.c.h.b16 %v1244
          %v1265 = vunpack.c.l.b16 %v1245
          %v1266 = vunpack.c.h.b16 %v1245
          %v1267 = vunpack.c.l.b16 %v1246
          %v1268 = vunpack.c.h.b16 %v1246
          %v1269 = vunpack.c.l.b16 %v1247
          %v1270 = vunpack.c.h.b16 %v1247
          %v1271 = vunpack.c.l.b16 %v1248
          %v1272 = vunpack.c.h.b16 %v1248
          %v1273 = vpack.c.b16 %v1257, %v1257
          %v1274 = vpack.c.b16 %v1258, %v1258
          %v1275 = vpack.c.b16 %v1259, %v1259
          %v1276 = vpack.c.b16 %v1260, %v1260
          %v1277 = vpack.c.b16 %v1261, %v1261
          %v1278 = vpack.c.b16 %v1262, %v1262
          %v1279 = vpack.c.b16 %v1263, %v1263
          %v1280 = vpack.c.b16 %v1264, %v1264
          %v1281 = vpack.c.b16 %v1265, %v1265
          %v1282 = vpack.c.b16 %v1266, %v1266
          %v1283 = vpack.c.b16 %v1267, %v1267
          %v1284 = vpack.c.b16 %v1268, %v1268
          %v1285 = vpack.c.b16 %v1269, %v1269
          %v1286 = vpack.c.b16 %v1270, %v1270
          %v1287 = vpack.c.b16 %v1271, %v1271
          %v1288 = vpack.c.b16 %v1272, %v1272
          %1305 = vst [vmem:[%s392] sm:$0xf] %v1273
          %1306 = vst [vmem:[%s392 + $0x4] sm:$0xf] %v1274
          %1307 = vst [vmem:[%s392 + $0x8] sm:$0xf] %v1275
          %1308 = vst [vmem:[%s392 + $0xc] sm:$0xf] %v1276
          %1309 = vst [vmem:[%s392 + $0x10] sm:$0xf] %v1277
          %1310 = vst [vmem:[%s392 + $0x14] sm:$0xf] %v1278
          %1311 = vst [vmem:[%s392 + $0x18] sm:$0xf] %v1279
          %1312 = vst [vmem:[%s392 + $0x1c] sm:$0xf] %v1280
          %1313 = vst [vmem:[%s392 + $0x20] sm:$0xf] %v1281
          %1314 = vst [vmem:[%s392 + $0x24] sm:$0xf] %v1282
          %1315 = vst [vmem:[%s392 + $0x28] sm:$0xf] %v1283
          %1316 = vst [vmem:[%s392 + $0x2c] sm:$0xf] %v1284
          %1317 = vst [vmem:[%s392 + $0x30] sm:$0xf] %v1285
          %1318 = vst [vmem:[%s392 + $0x34] sm:$0xf] %v1286
          %1319 = vst [vmem:[%s392 + $0x38] sm:$0xf] %v1287
          %1320 = vst [vmem:[%s392 + $0x3c] sm:$0xf] %v1288
        $region72: #{tpu_custom_call.1} parent=43 // pred_fallthru
          _
        %s1321 = sand.u32 %s190, 1
        %s1322 = scalar_lea.sflag [#allocation5], %s1321
        %s1323 = sand.u32 %s190, 1
        %s1324 = smul.addr %s1323, 64
        %s1325 = scalar_lea.vmem [#allocation12], %s1324
        // Predicated region
        $region73: #{tpu_custom_call.1} parent=43 // pred_check
          %p1326 = pneg %p200
        $region74: #{tpu_custom_call.1} parent=43 // pred_check_branch
          %1328 = sbr.rel (%p1326) target = $region76
        $region75: #{tpu_custom_call.1} parent=43 // pred_region
          %s1329 = smul.u32 16, %s31
          %s1331 = ssub.s32 1024, 1024
          %1332 = vsyncadd %s1322, %s1331
          %s1333 = smul.addr %s1329, 64
          %s1334 = scalar_lea.hbm %s6, %s1333
          %s1335 = sshll.u32 %s1325, 4
          %s1336 = int_to_ptr.vmem [resolvable:$true] %s1335
          %1341 = dma.vmem_to_hbm [thread:$0]  %s1336, 1024, %s1334, %s1322, 64, 64, 4
        $region76: #{tpu_custom_call.1} parent=43 // pred_fallthru
          _
      $region44: #{tpu_custom_call.1} parent=5 // pred_fallthru
        _
      %p1342 = scmp.le.s32.totalorder 2, %s22
      // Predicated region
      $region77: #{tpu_custom_call.1} parent=5 // pred_check
        %p1343 = pneg %p1342
      $region78: #{tpu_custom_call.1} parent=5 // pred_check_branch
        %1345 = sbr.rel (%p1343) target = $region80
      $region79: #{tpu_custom_call.1} parent=5 // pred_region
        %s1346 = ssub.s32 %s22, 2
        // Predicated region
        $region81: #{tpu_custom_call.1} parent=79 // pred_check
          %p1347 = pneg %p206
        $region82: #{tpu_custom_call.1} parent=79 // pred_check_branch
          %1349 = sbr.rel (%p1347) target = $region84
        $region83: #{tpu_custom_call.1} parent=79 // pred_region
          %s1350 = sand.u32 %s191, 1
          %s1351 = scalar_lea.sflag [#allocation5], %s1350
          %s1352 = sand.u32 %s191, 1
          %s1353 = smul.addr %s1352, 64
          %s1354 = scalar_lea.vmem [#allocation12], %s1353
          %1355 = dma.done %s1351, 1024
        $region84: #{tpu_custom_call.1} parent=79 // pred_fallthru
          _
      $region80: #{tpu_custom_call.1} parent=5 // pred_fallthru
        _
    $region6: #{tpu_custom_call.1} parent=1 // loop_footer
      %s26 = sadd.s32 1, %s22
    $region7: #{tpu_custom_call.1} parent=1 // loop_footer_branch
      %21 = sbr.rel target = $region3
    $region8: #{tpu_custom_call.1} parent=1 // loop_exit
      _
    %1356 = vsyncpa [#allocation4], 1
    %s1357 = scalar_lea.sflag [#allocation4], 1
    %1358 = vsyncpa %s1357, 1
    %1359 = vsyncpa [#allocation7], 1
    %s1360 = scalar_lea.sflag [#allocation7], 1
    %1361 = vsyncpa %s1360, 1
    %1362 = vsyncpa [#allocation10], 1
    %1363 = vsyncpa [#allocation5], 1
    %s1364 = scalar_lea.sflag [#allocation5], 1
    %1365 = vsyncpa %s1364, 1

</llo_original>
